<compile_context>
chip_gen: v7x
topology: tpu7x:2x2x1
jax: 0.10.0
libtpu: 0.0.40
codegen_flags: <defaults>
</compile_context>

<pallas_src>
import jax
import jax.numpy as jnp
from jax import lax
from jax.experimental import pallas as pl
from jax.experimental.pallas import tpu as pltpu


def make_rnn_kernel(T, TB, H, L):
    """TB = padded batch-tile size handled per grid step."""
    ROWS = T * TB  # rows of the time-major activation slab per tile

    def kernel(*refs):
        idx = 0
        ids_ref = refs[idx]; idx += 1            # (n_tiles*ROWS,) int32, SMEM
        table_ref = refs[idx]; idx += 1          # (V1, E) f32, HBM (pl.ANY)
        layers = []
        for _ in range(L):
            layers.append((refs[idx], refs[idx + 1], refs[idx + 2]))
            idx += 3                             # (in,H), (H,H), (1,H)
        wc_ref = refs[idx]; idx += 1             # (H, 2)
        bc_ref = refs[idx]; idx += 1             # (1, 2)
        out_ref = refs[idx]; idx += 1            # (ROWS, 2)  (tile dim squeezed)
        emb = refs[idx]; idx += 1                # (ROWS, E) VMEM scratch
        act_a = refs[idx]; idx += 1              # (ROWS, H) VMEM scratch
        act_b = refs[idx]; idx += 1              # (ROWS, H) VMEM scratch
        sem = refs[idx]; idx += 1                # DMA semaphore (scalar)

        tile = pl.program_id(0)

        # ---- 1) Embedding: DMA-gather the needed table rows HBM -> VMEM ----
        def _issue(r, carry):
            tok = ids_ref[tile * ROWS + r]
            pltpu.make_async_copy(table_ref.at[pl.ds(tok, 1)],
                                  emb.at[pl.ds(r, 1)], sem).start()
            return carry

        lax.fori_loop(0, ROWS, _issue, 0)

        def _wait(r, carry):
            pltpu.make_async_copy(table_ref.at[pl.ds(0, 1)],
                                  emb.at[pl.ds(r, 1)], sem).wait()
            return carry

        lax.fori_loop(0, ROWS, _wait, 0)

        # ---- 2) Stacked tanh RNN layers -------------------------------------
        in_buf = emb
        bufs = (act_a, act_b)
        for layer_idx in range(L):
            w_ih_ref, w_hh_ref, b_ref = layers[layer_idx]
            w_hh = w_hh_ref[...]                 # (H, H), already transposed
            o_buf = bufs[layer_idx % 2]

            # One big, loop-free input projection (+ fused biases) for all steps.
            o_buf[...] = (jnp.dot(in_buf[...], w_ih_ref[...],
                                  preferred_element_type=jnp.float32)
                          + b_ref[...])

            def step(t, h, o_buf=o_buf, w_hh=w_hh):
                r0 = pl.multiple_of(t * TB, TB)
                h_new = jnp.tanh(
                    o_buf[pl.ds(r0, TB), :]
                    + jnp.dot(h, w_hh, preferred_element_type=jnp.float32))
                o_buf[pl.ds(r0, TB), :] = h_new  # overwrite projection w/ hidden
                return h_new

            lax.fori_loop(0, T, step, jnp.zeros((TB, H), jnp.float32),
                          unroll=True)
            in_buf = o_buf

        # ---- 3) Classification head: one GEMM + one contiguous store --------
        logits = (jnp.dot(in_buf[...], wc_ref[...],
                          preferred_element_type=jnp.float32) + bc_ref[...])
        out_ref[...] = logits

    return kernel


def tensor_model_forward(ids_bt, params, *, batch_tile=8):
    """ids_bt: (B, T) int32 token ids (batch-first, like the PyTorch module)."""
    B, T = ids_bt.shape
    table = params["embedding"]
    _V1, E = table.shape
    H = params["rnn"][0]["w_hh"].shape[0]
    L = len(params["rnn"])

    # Pad batch to a multiple of the tile (pad ids = 0 -> zero embedding row).
    n_tiles = max(1, -(-B // batch_tile))
    B_pad = n_tiles * batch_tile
    rows = T * batch_tile

    ids_p = jnp.zeros((B_pad, T), jnp.int32).at[:B, :].set(ids_bt.astype(jnp.int32))
    # Tile i, local row r = t*batch_tile + b  ->  ids_flat[i*rows + r]
    ids_flat = jnp.transpose(ids_p.reshape(n_tiles, batch_tile, T),
                             (0, 2, 1)).reshape(n_tiles * rows)

    kernel_inputs = [table]
    in_dims = []
    for lp in params["rnn"]:
        in_dims.append(lp["w_ih"].shape[1])
        kernel_inputs.append(jnp.transpose(lp["w_ih"]))              # (in_dim, H)
        kernel_inputs.append(jnp.transpose(lp["w_hh"]))              # (H, H)
        kernel_inputs.append((lp["b_ih"] + lp["b_hh"])[None, :])     # (1, H)
    kernel_inputs.append(jnp.transpose(params["w_cls"]))             # (H, 2)
    kernel_inputs.append(params["b_cls"][None, :])                   # (1, 2)

    def _full(shape):
        n = len(shape)
        return pl.BlockSpec(shape, lambda i, ids, n=n: (0,) * n)

    in_specs = [pl.BlockSpec(memory_space=pl.ANY)]                   # table in HBM
    for d in in_dims:
        in_specs += [_full((d, H)), _full((H, H)), _full((1, H))]
    in_specs += [_full((H, 2)), _full((1, 2))]

    # Explicit VMEM budget: activation scratch + double-buffered weights/outputs.
    act_bytes = 4 * rows * (E + 2 * H)
    w_bytes = sum(int(a.size) * int(a.dtype.itemsize) for a in kernel_inputs[1:])
    out_bytes = 4 * rows * 2
    vmem_limit = int(min(max(act_bytes + 2 * w_bytes + 2 * out_bytes + (8 << 20),
                             32 << 20), 100 << 20))

    kernel = make_rnn_kernel(T, batch_tile, H, L)
    out = pl.pallas_call(
        kernel,
        out_shape=jax.ShapeDtypeStruct((n_tiles, rows, 2), jnp.float32),
        grid_spec=pltpu.PrefetchScalarGridSpec(
            num_scalar_prefetch=1,
            grid=(n_tiles,),
            in_specs=in_specs,
            out_specs=pl.BlockSpec((None, rows, 2), lambda i, ids: (i, 0, 0)),
            scratch_shapes=[pltpu.VMEM((rows, E), jnp.float32),
                            pltpu.VMEM((rows, H), jnp.float32),
                            pltpu.VMEM((rows, H), jnp.float32),
                            pltpu.SemaphoreType.DMA(())]),
        compiler_params=pltpu.CompilerParams(
            dimension_semantics=("parallel",),
            vmem_limit_bytes=vmem_limit),
    )(ids_flat, *kernel_inputs)

    # (n_tiles, T*tb, 2) time-major -> (B, T, 2) batch-first
    out = out.reshape(n_tiles, T, batch_tile, 2)
    out = jnp.transpose(out, (0, 2, 1, 3)).reshape(B_pad, T, 2)
    return out[:B]


def reference_forward(ids_bt, params):
    """Pure-JAX reference matching torch semantics (batch-first RNN, tanh)."""
    x = params["embedding"][ids_bt]                                  # (B, T, E)
    B, T, _ = x.shape
    for lp in params["rnn"]:
        H = lp["w_hh"].shape[0]
        h = jnp.zeros((B, H), jnp.float32)
        outs = []
        for t in range(T):
            h = jnp.tanh(x[:, t] @ lp["w_ih"].T + lp["b_ih"]
                         + h @ lp["w_hh"].T + lp["b_hh"])
            outs.append(h)
        x = jnp.stack(outs, axis=1)
    return x @ params["w_cls"].T + params["b_cls"]


def init_params(key, vocab_size, E, H, L):
    V1 = vocab_size + 1
    keys = jax.random.split(key, 3 + 4 * L)
    table = jax.random.normal(keys[0], (V1, E), jnp.float32)
    table = table.at[0].set(0.0)                                     # padding_idx=0
    s = float(1.0 / (H ** 0.5))
    rnn = []
    ki = 1
    for l in range(L):
        in_dim = E if l == 0 else H
        w_ih = jax.random.uniform(keys[ki], (H, in_dim), jnp.float32, -s, s); ki += 1
        w_hh = jax.random.uniform(keys[ki], (H, H), jnp.float32, -s, s); ki += 1
        b_ih = jax.random.uniform(keys[ki], (H,), jnp.float32, -s, s); ki += 1
        b_hh = jax.random.uniform(keys[ki], (H,), jnp.float32, -s, s); ki += 1
        rnn.append(dict(w_ih=w_ih, w_hh=w_hh, b_ih=b_ih, b_hh=b_hh))
    w_cls = jax.random.uniform(keys[ki], (2, H), jnp.float32, -s, s); ki += 1
    b_cls = jax.random.uniform(keys[ki], (2,), jnp.float32, -s, s)
    return dict(embedding=table, rnn=rnn, w_cls=w_cls, b_cls=b_cls)


if __name__ == "__main__":
    B, T = 2, 8           # batch, sequence length
    E, H, L = 32, 32, 2   # embedding_dim, hidden_size, num_rnn_layer
    vocab_size = 20       # len(vocab); table has vocab_size + 1 rows

    key = jax.random.PRNGKey(0)
    k_ids, k_par = jax.random.split(key)
    params = init_params(k_par, vocab_size, E, H, L)
    ids = jax.random.randint(k_ids, (B, T), 0, vocab_size + 1, dtype=jnp.int32)

    y = tensor_model_forward(ids, params)
    y = jax.block_until_ready(y)

    y_ref = reference_forward(ids, params)
    assert y.shape == (B, T, 2)
    max_err = float(jnp.max(jnp.abs(y - y_ref)))
    assert max_err < 2e-3, f"mismatch vs reference, max abs err = {max_err}"

    print("KERNEL_OK")
</pallas_src>

<mosaic_0001>
module attributes {stable_mosaic.version = 11 : i64} {
  func.func @kernel(%arg0: i32, %arg1: memref<64xi32, #tpu.memory_space<smem>>, %arg2: memref<21x32xf32, #tpu.memory_space<any>>, %arg3: memref<32x32xf32, #tpu.memory_space<vmem>>, %arg4: memref<32x32xf32, #tpu.memory_space<vmem>>, %arg5: memref<1x32xf32, #tpu.memory_space<vmem>>, %arg6: memref<32x32xf32, #tpu.memory_space<vmem>>, %arg7: memref<32x32xf32, #tpu.memory_space<vmem>>, %arg8: memref<1x32xf32, #tpu.memory_space<vmem>>, %arg9: memref<32x2xf32, #tpu.memory_space<vmem>>, %arg10: memref<1x2xf32, #tpu.memory_space<vmem>>, %arg11: memref<1x64x2xf32, #tpu.memory_space<vmem>>, %arg12: memref<64x32xf32, #tpu.memory_space<vmem>>, %arg13: memref<64x32xf32, #tpu.memory_space<vmem>>, %arg14: memref<64x32xf32, #tpu.memory_space<vmem>>, %arg15: memref<!tpu.dma_semaphore, #tpu.memory_space<semaphore_mem>>) attributes {dimension_semantics = [#tpu.dimension_semantics<parallel>], iteration_bounds = array<i64: 1>, scalar_prefetch = 1 : i64, scratch_operands = 4 : i64, tpu.core_type = #tpu.core_type<tc>, window_params = [{}, {pipeline_mode = #tpu.pipeline_mode<synchronous>, transform_indices = @transform_1, window_bounds = array<i64: 32, 32>}, {pipeline_mode = #tpu.pipeline_mode<synchronous>, transform_indices = @transform_2, window_bounds = array<i64: 32, 32>}, {pipeline_mode = #tpu.pipeline_mode<synchronous>, transform_indices = @transform_3, window_bounds = array<i64: 1, 32>}, {pipeline_mode = #tpu.pipeline_mode<synchronous>, transform_indices = @transform_4, window_bounds = array<i64: 32, 32>}, {pipeline_mode = #tpu.pipeline_mode<synchronous>, transform_indices = @transform_5, window_bounds = array<i64: 32, 32>}, {pipeline_mode = #tpu.pipeline_mode<synchronous>, transform_indices = @transform_6, window_bounds = array<i64: 1, 32>}, {pipeline_mode = #tpu.pipeline_mode<synchronous>, transform_indices = @transform_7, window_bounds = array<i64: 32, 2>}, {pipeline_mode = #tpu.pipeline_mode<synchronous>, transform_indices = @transform_8, window_bounds = array<i64: 1, 2>}, {transform_indices = @transform_9, window_bounds = array<i64: 1, 64, 2>}]} {
    %c0_i32 = arith.constant 0 : i32
    %c64_i32 = arith.constant 64 : i32
    %0 = arith.addi %c0_i32, %c64_i32 : i32
    %c1_i32 = arith.constant 1 : i32
    scf.for %arg16 = %c0_i32 to %0 step %c1_i32  : i32 {
      %c64_i32_112 = arith.constant 64 : i32
      %173 = arith.muli %arg0, %c64_i32_112 : i32
      %174 = arith.addi %173, %arg16 : i32
      %175 = arith.index_cast %174 : i32 to index
      %176 = memref.load %arg1[%175] : memref<64xi32, #tpu.memory_space<smem>>
      %c0_i32_113 = arith.constant 0 : i32
      %177 = tpu.memref_slice %arg2[%176, %c0_i32_113] : memref<21x32xf32, #tpu.memory_space<any>> -> memref<1x32xf32, #tpu.memory_space<any>>
      %c0_i32_114 = arith.constant 0 : i32
      %178 = tpu.memref_slice %arg12[%arg16, %c0_i32_114] : memref<64x32xf32, #tpu.memory_space<vmem>> -> memref<1x32xf32, #tpu.memory_space<vmem>>
      tpu.enqueue_dma source(%177 : memref<1x32xf32, #tpu.memory_space<any>>) target(%178 : memref<1x32xf32, #tpu.memory_space<vmem>>) target_semaphore(%arg15 : memref<!tpu.dma_semaphore, #tpu.memory_space<semaphore_mem>>)
    }
    %c64_i32_0 = arith.constant 64 : i32
    %c0_i32_1 = arith.constant 0 : i32
    %c64_i32_2 = arith.constant 64 : i32
    %1 = arith.addi %c0_i32_1, %c64_i32_2 : i32
    %c1_i32_3 = arith.constant 1 : i32
    scf.for %arg16 = %c0_i32_1 to %1 step %c1_i32_3  : i32 {
      %c0_i32_112 = arith.constant 0 : i32
      %c0_i32_113 = arith.constant 0 : i32
      %173 = tpu.memref_slice %arg2[%c0_i32_112, %c0_i32_113] : memref<21x32xf32, #tpu.memory_space<any>> -> memref<1x32xf32, #tpu.memory_space<any>>
      %c0_i32_114 = arith.constant 0 : i32
      %174 = tpu.memref_slice %arg12[%arg16, %c0_i32_114] : memref<64x32xf32, #tpu.memory_space<vmem>> -> memref<1x32xf32, #tpu.memory_space<vmem>>
      tpu.wait_dma2 semaphore(%arg15 : memref<!tpu.dma_semaphore, #tpu.memory_space<semaphore_mem>>) src(%173 : memref<1x32xf32, #tpu.memory_space<any>>) dst(%174 : memref<1x32xf32, #tpu.memory_space<vmem>>)
    }
    %c64_i32_4 = arith.constant 64 : i32
    %c0 = arith.constant 0 : index
    %c0_5 = arith.constant 0 : index
    %2 = vector.load %arg4[%c0, %c0_5] : memref<32x32xf32, #tpu.memory_space<vmem>>, vector<32x32xf32>
    %c0_6 = arith.constant 0 : index
    %c0_7 = arith.constant 0 : index
    %3 = vector.load %arg12[%c0_6, %c0_7] : memref<64x32xf32, #tpu.memory_space<vmem>>, vector<64x32xf32>
    %c0_8 = arith.constant 0 : index
    %c0_9 = arith.constant 0 : index
    %4 = vector.load %arg3[%c0_8, %c0_9] : memref<32x32xf32, #tpu.memory_space<vmem>>, vector<32x32xf32>
    %cst = arith.constant dense<0.000000e+00> : vector<64x32xf32>
    %5 = tpu.matmul %3, %4, %cst {dimension_numbers = #tpu.dot_dimension_numbers<[1], [0], [0], [1], [0, 0, 1, 1], [], []>} : vector<64x32xf32>, vector<32x32xf32>, vector<64x32xf32> -> vector<64x32xf32>
    %c0_10 = arith.constant 0 : index
    %c0_11 = arith.constant 0 : index
    %6 = vector.load %arg5[%c0_10, %c0_11] : memref<1x32xf32, #tpu.memory_space<vmem>>, vector<1x32xf32>
    %7 = vector.broadcast %6 : vector<1x32xf32> to vector<64x32xf32>
    %8 = arith.addf %5, %7 : vector<64x32xf32>
    %c0_12 = arith.constant 0 : index
    %c0_13 = arith.constant 0 : index
    %9 = vector.load %arg13[%c0_12, %c0_13] : memref<64x32xf32, #tpu.memory_space<vmem>>, vector<64x32xf32>
    tpu.vector_store %arg13[%c0_12, %c0_13], %8 {strides = array<i32>} : memref<64x32xf32, #tpu.memory_space<vmem>>, vector<64x32xf32>,
    %cst_14 = arith.constant 0.000000e+00 : f32
    %10 = vector.broadcast %cst_14 : f32 to vector<8x32xf32>
    %c0_i32_15 = arith.constant 0 : i32
    %c8_i32 = arith.constant 8 : i32
    %11 = arith.muli %c0_i32_15, %c8_i32 : i32
    %12 = tpu.assume_multiple %11, 8 : i32
    %13 = arith.index_cast %12 : i32 to index
    %c0_16 = arith.constant 0 : index
    %14 = vector.load %arg13[%13, %c0_16] : memref<64x32xf32, #tpu.memory_space<vmem>>, vector<8x32xf32>
    %cst_17 = arith.constant dense<0.000000e+00> : vector<8x32xf32>
    %15 = tpu.matmul %10, %2, %cst_17 {dimension_numbers = #tpu.dot_dimension_numbers<[1], [0], [0], [1], [0, 0, 1, 1], [], []>} : vector<8x32xf32>, vector<32x32xf32>, vector<8x32xf32> -> vector<8x32xf32>
    %16 = arith.addf %14, %15 : vector<8x32xf32>
    %17 = math.tanh %16 : vector<8x32xf32>
    %18 = arith.index_cast %12 : i32 to index
    %c0_18 = arith.constant 0 : index
    %19 = vector.load %arg13[%18, %c0_18] : memref<64x32xf32, #tpu.memory_space<vmem>>, vector<8x32xf32>
    tpu.vector_store %arg13[%18, %c0_18], %17 {strides = array<i32>} : memref<64x32xf32, #tpu.memory_space<vmem>>, vector<8x32xf32>,
    %c1_i32_19 = arith.constant 1 : i32
    %c8_i32_20 = arith.constant 8 : i32
    %20 = arith.muli %c1_i32_19, %c8_i32_20 : i32
    %21 = tpu.assume_multiple %20, 8 : i32
    %22 = arith.index_cast %21 : i32 to index
    %c0_21 = arith.constant 0 : index
    %23 = vector.load %arg13[%22, %c0_21] : memref<64x32xf32, #tpu.memory_space<vmem>>, vector<8x32xf32>
    %cst_22 = arith.constant dense<0.000000e+00> : vector<8x32xf32>
    %24 = tpu.matmul %17, %2, %cst_22 {dimension_numbers = #tpu.dot_dimension_numbers<[1], [0], [0], [1], [0, 0, 1, 1], [], []>} : vector<8x32xf32>, vector<32x32xf32>, vector<8x32xf32> -> vector<8x32xf32>
    %25 = arith.addf %23, %24 : vector<8x32xf32>
    %26 = math.tanh %25 : vector<8x32xf32>
    %27 = arith.index_cast %21 : i32 to index
    %c0_23 = arith.constant 0 : index
    %28 = vector.load %arg13[%27, %c0_23] : memref<64x32xf32, #tpu.memory_space<vmem>>, vector<8x32xf32>
    tpu.vector_store %arg13[%27, %c0_23], %26 {strides = array<i32>} : memref<64x32xf32, #tpu.memory_space<vmem>>, vector<8x32xf32>,
    %c2_i32 = arith.constant 2 : i32
    %c8_i32_24 = arith.constant 8 : i32
    %29 = arith.muli %c2_i32, %c8_i32_24 : i32
    %30 = tpu.assume_multiple %29, 8 : i32
    %31 = arith.index_cast %30 : i32 to index
    %c0_25 = arith.constant 0 : index
    %32 = vector.load %arg13[%31, %c0_25] : memref<64x32xf32, #tpu.memory_space<vmem>>, vector<8x32xf32>
    %cst_26 = arith.constant dense<0.000000e+00> : vector<8x32xf32>
    %33 = tpu.matmul %26, %2, %cst_26 {dimension_numbers = #tpu.dot_dimension_numbers<[1], [0], [0], [1], [0, 0, 1, 1], [], []>} : vector<8x32xf32>, vector<32x32xf32>, vector<8x32xf32> -> vector<8x32xf32>
    %34 = arith.addf %32, %33 : vector<8x32xf32>
    %35 = math.tanh %34 : vector<8x32xf32>
    %36 = arith.index_cast %30 : i32 to index
    %c0_27 = arith.constant 0 : index
    %37 = vector.load %arg13[%36, %c0_27] : memref<64x32xf32, #tpu.memory_space<vmem>>, vector<8x32xf32>
    tpu.vector_store %arg13[%36, %c0_27], %35 {strides = array<i32>} : memref<64x32xf32, #tpu.memory_space<vmem>>, vector<8x32xf32>,
    %c3_i32 = arith.constant 3 : i32
    %c8_i32_28 = arith.constant 8 : i32
    %38 = arith.muli %c3_i32, %c8_i32_28 : i32
    %39 = tpu.assume_multiple %38, 8 : i32
    %40 = arith.index_cast %39 : i32 to index
    %c0_29 = arith.constant 0 : index
    %41 = vector.load %arg13[%40, %c0_29] : memref<64x32xf32, #tpu.memory_space<vmem>>, vector<8x32xf32>
    %cst_30 = arith.constant dense<0.000000e+00> : vector<8x32xf32>
    %42 = tpu.matmul %35, %2, %cst_30 {dimension_numbers = #tpu.dot_dimension_numbers<[1], [0], [0], [1], [0, 0, 1, 1], [], []>} : vector<8x32xf32>, vector<32x32xf32>, vector<8x32xf32> -> vector<8x32xf32>
    %43 = arith.addf %41, %42 : vector<8x32xf32>
    %44 = math.tanh %43 : vector<8x32xf32>
    %45 = arith.index_cast %39 : i32 to index
    %c0_31 = arith.constant 0 : index
    %46 = vector.load %arg13[%45, %c0_31] : memref<64x32xf32, #tpu.memory_space<vmem>>, vector<8x32xf32>
    tpu.vector_store %arg13[%45, %c0_31], %44 {strides = array<i32>} : memref<64x32xf32, #tpu.memory_space<vmem>>, vector<8x32xf32>,
    %c4_i32 = arith.constant 4 : i32
    %c8_i32_32 = arith.constant 8 : i32
    %47 = arith.muli %c4_i32, %c8_i32_32 : i32
    %48 = tpu.assume_multiple %47, 8 : i32
    %49 = arith.index_cast %48 : i32 to index
    %c0_33 = arith.constant 0 : index
    %50 = vector.load %arg13[%49, %c0_33] : memref<64x32xf32, #tpu.memory_space<vmem>>, vector<8x32xf32>
    %cst_34 = arith.constant dense<0.000000e+00> : vector<8x32xf32>
    %51 = tpu.matmul %44, %2, %cst_34 {dimension_numbers = #tpu.dot_dimension_numbers<[1], [0], [0], [1], [0, 0, 1, 1], [], []>} : vector<8x32xf32>, vector<32x32xf32>, vector<8x32xf32> -> vector<8x32xf32>
    %52 = arith.addf %50, %51 : vector<8x32xf32>
    %53 = math.tanh %52 : vector<8x32xf32>
    %54 = arith.index_cast %48 : i32 to index
    %c0_35 = arith.constant 0 : index
    %55 = vector.load %arg13[%54, %c0_35] : memref<64x32xf32, #tpu.memory_space<vmem>>, vector<8x32xf32>
    tpu.vector_store %arg13[%54, %c0_35], %53 {strides = array<i32>} : memref<64x32xf32, #tpu.memory_space<vmem>>, vector<8x32xf32>,
    %c5_i32 = arith.constant 5 : i32
    %c8_i32_36 = arith.constant 8 : i32
    %56 = arith.muli %c5_i32, %c8_i32_36 : i32
    %57 = tpu.assume_multiple %56, 8 : i32
    %58 = arith.index_cast %57 : i32 to index
    %c0_37 = arith.constant 0 : index
    %59 = vector.load %arg13[%58, %c0_37] : memref<64x32xf32, #tpu.memory_space<vmem>>, vector<8x32xf32>
    %cst_38 = arith.constant dense<0.000000e+00> : vector<8x32xf32>
    %60 = tpu.matmul %53, %2, %cst_38 {dimension_numbers = #tpu.dot_dimension_numbers<[1], [0], [0], [1], [0, 0, 1, 1], [], []>} : vector<8x32xf32>, vector<32x32xf32>, vector<8x32xf32> -> vector<8x32xf32>
    %61 = arith.addf %59, %60 : vector<8x32xf32>
    %62 = math.tanh %61 : vector<8x32xf32>
    %63 = arith.index_cast %57 : i32 to index
    %c0_39 = arith.constant 0 : index
    %64 = vector.load %arg13[%63, %c0_39] : memref<64x32xf32, #tpu.memory_space<vmem>>, vector<8x32xf32>
    tpu.vector_store %arg13[%63, %c0_39], %62 {strides = array<i32>} : memref<64x32xf32, #tpu.memory_space<vmem>>, vector<8x32xf32>,
    %c6_i32 = arith.constant 6 : i32
    %c8_i32_40 = arith.constant 8 : i32
    %65 = arith.muli %c6_i32, %c8_i32_40 : i32
    %66 = tpu.assume_multiple %65, 8 : i32
    %67 = arith.index_cast %66 : i32 to index
    %c0_41 = arith.constant 0 : index
    %68 = vector.load %arg13[%67, %c0_41] : memref<64x32xf32, #tpu.memory_space<vmem>>, vector<8x32xf32>
    %cst_42 = arith.constant dense<0.000000e+00> : vector<8x32xf32>
    %69 = tpu.matmul %62, %2, %cst_42 {dimension_numbers = #tpu.dot_dimension_numbers<[1], [0], [0], [1], [0, 0, 1, 1], [], []>} : vector<8x32xf32>, vector<32x32xf32>, vector<8x32xf32> -> vector<8x32xf32>
    %70 = arith.addf %68, %69 : vector<8x32xf32>
    %71 = math.tanh %70 : vector<8x32xf32>
    %72 = arith.index_cast %66 : i32 to index
    %c0_43 = arith.constant 0 : index
    %73 = vector.load %arg13[%72, %c0_43] : memref<64x32xf32, #tpu.memory_space<vmem>>, vector<8x32xf32>
    tpu.vector_store %arg13[%72, %c0_43], %71 {strides = array<i32>} : memref<64x32xf32, #tpu.memory_space<vmem>>, vector<8x32xf32>,
    %c7_i32 = arith.constant 7 : i32
    %c8_i32_44 = arith.constant 8 : i32
    %74 = arith.muli %c7_i32, %c8_i32_44 : i32
    %75 = tpu.assume_multiple %74, 8 : i32
    %76 = arith.index_cast %75 : i32 to index
    %c0_45 = arith.constant 0 : index
    %77 = vector.load %arg13[%76, %c0_45] : memref<64x32xf32, #tpu.memory_space<vmem>>, vector<8x32xf32>
    %cst_46 = arith.constant dense<0.000000e+00> : vector<8x32xf32>
    %78 = tpu.matmul %71, %2, %cst_46 {dimension_numbers = #tpu.dot_dimension_numbers<[1], [0], [0], [1], [0, 0, 1, 1], [], []>} : vector<8x32xf32>, vector<32x32xf32>, vector<8x32xf32> -> vector<8x32xf32>
    %79 = arith.addf %77, %78 : vector<8x32xf32>
    %80 = math.tanh %79 : vector<8x32xf32>
    %81 = arith.index_cast %75 : i32 to index
    %c0_47 = arith.constant 0 : index
    %82 = vector.load %arg13[%81, %c0_47] : memref<64x32xf32, #tpu.memory_space<vmem>>, vector<8x32xf32>
    tpu.vector_store %arg13[%81, %c0_47], %80 {strides = array<i32>} : memref<64x32xf32, #tpu.memory_space<vmem>>, vector<8x32xf32>,
    %c8_i32_48 = arith.constant 8 : i32
    %c0_49 = arith.constant 0 : index
    %c0_50 = arith.constant 0 : index
    %83 = vector.load %arg7[%c0_49, %c0_50] : memref<32x32xf32, #tpu.memory_space<vmem>>, vector<32x32xf32>
    %c0_51 = arith.constant 0 : index
    %c0_52 = arith.constant 0 : index
    %84 = vector.load %arg13[%c0_51, %c0_52] : memref<64x32xf32, #tpu.memory_space<vmem>>, vector<64x32xf32>
    %c0_53 = arith.constant 0 : index
    %c0_54 = arith.constant 0 : index
    %85 = vector.load %arg6[%c0_53, %c0_54] : memref<32x32xf32, #tpu.memory_space<vmem>>, vector<32x32xf32>
    %cst_55 = arith.constant dense<0.000000e+00> : vector<64x32xf32>
    %86 = tpu.matmul %84, %85, %cst_55 {dimension_numbers = #tpu.dot_dimension_numbers<[1], [0], [0], [1], [0, 0, 1, 1], [], []>} : vector<64x32xf32>, vector<32x32xf32>, vector<64x32xf32> -> vector<64x32xf32>
    %c0_56 = arith.constant 0 : index
    %c0_57 = arith.constant 0 : index
    %87 = vector.load %arg8[%c0_56, %c0_57] : memref<1x32xf32, #tpu.memory_space<vmem>>, vector<1x32xf32>
    %88 = vector.broadcast %87 : vector<1x32xf32> to vector<64x32xf32>
    %89 = arith.addf %86, %88 : vector<64x32xf32>
    %c0_58 = arith.constant 0 : index
    %c0_59 = arith.constant 0 : index
    %90 = vector.load %arg14[%c0_58, %c0_59] : memref<64x32xf32, #tpu.memory_space<vmem>>, vector<64x32xf32>
    tpu.vector_store %arg14[%c0_58, %c0_59], %89 {strides = array<i32>} : memref<64x32xf32, #tpu.memory_space<vmem>>, vector<64x32xf32>,
    %cst_60 = arith.constant 0.000000e+00 : f32
    %91 = vector.broadcast %cst_60 : f32 to vector<8x32xf32>
    %c0_i32_61 = arith.constant 0 : i32
    %c8_i32_62 = arith.constant 8 : i32
    %92 = arith.muli %c0_i32_61, %c8_i32_62 : i32
    %93 = tpu.assume_multiple %92, 8 : i32
    %94 = arith.index_cast %93 : i32 to index
    %c0_63 = arith.constant 0 : index
    %95 = vector.load %arg14[%94, %c0_63] : memref<64x32xf32, #tpu.memory_space<vmem>>, vector<8x32xf32>
    %cst_64 = arith.constant dense<0.000000e+00> : vector<8x32xf32>
    %96 = tpu.matmul %91, %83, %cst_64 {dimension_numbers = #tpu.dot_dimension_numbers<[1], [0], [0], [1], [0, 0, 1, 1], [], []>} : vector<8x32xf32>, vector<32x32xf32>, vector<8x32xf32> -> vector<8x32xf32>
    %97 = arith.addf %95, %96 : vector<8x32xf32>
    %98 = math.tanh %97 : vector<8x32xf32>
    %99 = arith.index_cast %93 : i32 to index
    %c0_65 = arith.constant 0 : index
    %100 = vector.load %arg14[%99, %c0_65] : memref<64x32xf32, #tpu.memory_space<vmem>>, vector<8x32xf32>
    tpu.vector_store %arg14[%99, %c0_65], %98 {strides = array<i32>} : memref<64x32xf32, #tpu.memory_space<vmem>>, vector<8x32xf32>,
    %c1_i32_66 = arith.constant 1 : i32
    %c8_i32_67 = arith.constant 8 : i32
    %101 = arith.muli %c1_i32_66, %c8_i32_67 : i32
    %102 = tpu.assume_multiple %101, 8 : i32
    %103 = arith.index_cast %102 : i32 to index
    %c0_68 = arith.constant 0 : index
    %104 = vector.load %arg14[%103, %c0_68] : memref<64x32xf32, #tpu.memory_space<vmem>>, vector<8x32xf32>
    %cst_69 = arith.constant dense<0.000000e+00> : vector<8x32xf32>
    %105 = tpu.matmul %98, %83, %cst_69 {dimension_numbers = #tpu.dot_dimension_numbers<[1], [0], [0], [1], [0, 0, 1, 1], [], []>} : vector<8x32xf32>, vector<32x32xf32>, vector<8x32xf32> -> vector<8x32xf32>
    %106 = arith.addf %104, %105 : vector<8x32xf32>
    %107 = math.tanh %106 : vector<8x32xf32>
    %108 = arith.index_cast %102 : i32 to index
    %c0_70 = arith.constant 0 : index
    %109 = vector.load %arg14[%108, %c0_70] : memref<64x32xf32, #tpu.memory_space<vmem>>, vector<8x32xf32>
    tpu.vector_store %arg14[%108, %c0_70], %107 {strides = array<i32>} : memref<64x32xf32, #tpu.memory_space<vmem>>, vector<8x32xf32>,
    %c2_i32_71 = arith.constant 2 : i32
    %c8_i32_72 = arith.constant 8 : i32
    %110 = arith.muli %c2_i32_71, %c8_i32_72 : i32
    %111 = tpu.assume_multiple %110, 8 : i32
    %112 = arith.index_cast %111 : i32 to index
    %c0_73 = arith.constant 0 : index
    %113 = vector.load %arg14[%112, %c0_73] : memref<64x32xf32, #tpu.memory_space<vmem>>, vector<8x32xf32>
    %cst_74 = arith.constant dense<0.000000e+00> : vector<8x32xf32>
    %114 = tpu.matmul %107, %83, %cst_74 {dimension_numbers = #tpu.dot_dimension_numbers<[1], [0], [0], [1], [0, 0, 1, 1], [], []>} : vector<8x32xf32>, vector<32x32xf32>, vector<8x32xf32> -> vector<8x32xf32>
    %115 = arith.addf %113, %114 : vector<8x32xf32>
    %116 = math.tanh %115 : vector<8x32xf32>
    %117 = arith.index_cast %111 : i32 to index
    %c0_75 = arith.constant 0 : index
    %118 = vector.load %arg14[%117, %c0_75] : memref<64x32xf32, #tpu.memory_space<vmem>>, vector<8x32xf32>
    tpu.vector_store %arg14[%117, %c0_75], %116 {strides = array<i32>} : memref<64x32xf32, #tpu.memory_space<vmem>>, vector<8x32xf32>,
    %c3_i32_76 = arith.constant 3 : i32
    %c8_i32_77 = arith.constant 8 : i32
    %119 = arith.muli %c3_i32_76, %c8_i32_77 : i32
    %120 = tpu.assume_multiple %119, 8 : i32
    %121 = arith.index_cast %120 : i32 to index
    %c0_78 = arith.constant 0 : index
    %122 = vector.load %arg14[%121, %c0_78] : memref<64x32xf32, #tpu.memory_space<vmem>>, vector<8x32xf32>
    %cst_79 = arith.constant dense<0.000000e+00> : vector<8x32xf32>
    %123 = tpu.matmul %116, %83, %cst_79 {dimension_numbers = #tpu.dot_dimension_numbers<[1], [0], [0], [1], [0, 0, 1, 1], [], []>} : vector<8x32xf32>, vector<32x32xf32>, vector<8x32xf32> -> vector<8x32xf32>
    %124 = arith.addf %122, %123 : vector<8x32xf32>
    %125 = math.tanh %124 : vector<8x32xf32>
    %126 = arith.index_cast %120 : i32 to index
    %c0_80 = arith.constant 0 : index
    %127 = vector.load %arg14[%126, %c0_80] : memref<64x32xf32, #tpu.memory_space<vmem>>, vector<8x32xf32>
    tpu.vector_store %arg14[%126, %c0_80], %125 {strides = array<i32>} : memref<64x32xf32, #tpu.memory_space<vmem>>, vector<8x32xf32>,
    %c4_i32_81 = arith.constant 4 : i32
    %c8_i32_82 = arith.constant 8 : i32
    %128 = arith.muli %c4_i32_81, %c8_i32_82 : i32
    %129 = tpu.assume_multiple %128, 8 : i32
    %130 = arith.index_cast %129 : i32 to index
    %c0_83 = arith.constant 0 : index
    %131 = vector.load %arg14[%130, %c0_83] : memref<64x32xf32, #tpu.memory_space<vmem>>, vector<8x32xf32>
    %cst_84 = arith.constant dense<0.000000e+00> : vector<8x32xf32>
    %132 = tpu.matmul %125, %83, %cst_84 {dimension_numbers = #tpu.dot_dimension_numbers<[1], [0], [0], [1], [0, 0, 1, 1], [], []>} : vector<8x32xf32>, vector<32x32xf32>, vector<8x32xf32> -> vector<8x32xf32>
    %133 = arith.addf %131, %132 : vector<8x32xf32>
    %134 = math.tanh %133 : vector<8x32xf32>
    %135 = arith.index_cast %129 : i32 to index
    %c0_85 = arith.constant 0 : index
    %136 = vector.load %arg14[%135, %c0_85] : memref<64x32xf32, #tpu.memory_space<vmem>>, vector<8x32xf32>
    tpu.vector_store %arg14[%135, %c0_85], %134 {strides = array<i32>} : memref<64x32xf32, #tpu.memory_space<vmem>>, vector<8x32xf32>,
    %c5_i32_86 = arith.constant 5 : i32
    %c8_i32_87 = arith.constant 8 : i32
    %137 = arith.muli %c5_i32_86, %c8_i32_87 : i32
    %138 = tpu.assume_multiple %137, 8 : i32
    %139 = arith.index_cast %138 : i32 to index
    %c0_88 = arith.constant 0 : index
    %140 = vector.load %arg14[%139, %c0_88] : memref<64x32xf32, #tpu.memory_space<vmem>>, vector<8x32xf32>
    %cst_89 = arith.constant dense<0.000000e+00> : vector<8x32xf32>
    %141 = tpu.matmul %134, %83, %cst_89 {dimension_numbers = #tpu.dot_dimension_numbers<[1], [0], [0], [1], [0, 0, 1, 1], [], []>} : vector<8x32xf32>, vector<32x32xf32>, vector<8x32xf32> -> vector<8x32xf32>
    %142 = arith.addf %140, %141 : vector<8x32xf32>
    %143 = math.tanh %142 : vector<8x32xf32>
    %144 = arith.index_cast %138 : i32 to index
    %c0_90 = arith.constant 0 : index
    %145 = vector.load %arg14[%144, %c0_90] : memref<64x32xf32, #tpu.memory_space<vmem>>, vector<8x32xf32>
    tpu.vector_store %arg14[%144, %c0_90], %143 {strides = array<i32>} : memref<64x32xf32, #tpu.memory_space<vmem>>, vector<8x32xf32>,
    %c6_i32_91 = arith.constant 6 : i32
    %c8_i32_92 = arith.constant 8 : i32
    %146 = arith.muli %c6_i32_91, %c8_i32_92 : i32
    %147 = tpu.assume_multiple %146, 8 : i32
    %148 = arith.index_cast %147 : i32 to index
    %c0_93 = arith.constant 0 : index
    %149 = vector.load %arg14[%148, %c0_93] : memref<64x32xf32, #tpu.memory_space<vmem>>, vector<8x32xf32>
    %cst_94 = arith.constant dense<0.000000e+00> : vector<8x32xf32>
    %150 = tpu.matmul %143, %83, %cst_94 {dimension_numbers = #tpu.dot_dimension_numbers<[1], [0], [0], [1], [0, 0, 1, 1], [], []>} : vector<8x32xf32>, vector<32x32xf32>, vector<8x32xf32> -> vector<8x32xf32>
    %151 = arith.addf %149, %150 : vector<8x32xf32>
    %152 = math.tanh %151 : vector<8x32xf32>
    %153 = arith.index_cast %147 : i32 to index
    %c0_95 = arith.constant 0 : index
    %154 = vector.load %arg14[%153, %c0_95] : memref<64x32xf32, #tpu.memory_space<vmem>>, vector<8x32xf32>
    tpu.vector_store %arg14[%153, %c0_95], %152 {strides = array<i32>} : memref<64x32xf32, #tpu.memory_space<vmem>>, vector<8x32xf32>,
    %c7_i32_96 = arith.constant 7 : i32
    %c8_i32_97 = arith.constant 8 : i32
    %155 = arith.muli %c7_i32_96, %c8_i32_97 : i32
    %156 = tpu.assume_multiple %155, 8 : i32
    %157 = arith.index_cast %156 : i32 to index
    %c0_98 = arith.constant 0 : index
    %158 = vector.load %arg14[%157, %c0_98] : memref<64x32xf32, #tpu.memory_space<vmem>>, vector<8x32xf32>
    %cst_99 = arith.constant dense<0.000000e+00> : vector<8x32xf32>
    %159 = tpu.matmul %152, %83, %cst_99 {dimension_numbers = #tpu.dot_dimension_numbers<[1], [0], [0], [1], [0, 0, 1, 1], [], []>} : vector<8x32xf32>, vector<32x32xf32>, vector<8x32xf32> -> vector<8x32xf32>
    %160 = arith.addf %158, %159 : vector<8x32xf32>
    %161 = math.tanh %160 : vector<8x32xf32>
    %162 = arith.index_cast %156 : i32 to index
    %c0_100 = arith.constant 0 : index
    %163 = vector.load %arg14[%162, %c0_100] : memref<64x32xf32, #tpu.memory_space<vmem>>, vector<8x32xf32>
    tpu.vector_store %arg14[%162, %c0_100], %161 {strides = array<i32>} : memref<64x32xf32, #tpu.memory_space<vmem>>, vector<8x32xf32>,
    %c8_i32_101 = arith.constant 8 : i32
    %c0_102 = arith.constant 0 : index
    %c0_103 = arith.constant 0 : index
    %164 = vector.load %arg14[%c0_102, %c0_103] : memref<64x32xf32, #tpu.memory_space<vmem>>, vector<64x32xf32>
    %c0_104 = arith.constant 0 : index
    %c0_105 = arith.constant 0 : index
    %165 = vector.load %arg9[%c0_104, %c0_105] : memref<32x2xf32, #tpu.memory_space<vmem>>, vector<32x2xf32>
    %cst_106 = arith.constant dense<0.000000e+00> : vector<64x2xf32>
    %166 = tpu.matmul %164, %165, %cst_106 {dimension_numbers = #tpu.dot_dimension_numbers<[1], [0], [0], [1], [0, 0, 1, 1], [], []>} : vector<64x32xf32>, vector<32x2xf32>, vector<64x2xf32> -> vector<64x2xf32>
    %c0_107 = arith.constant 0 : index
    %c0_108 = arith.constant 0 : index
    %167 = vector.load %arg10[%c0_107, %c0_108] : memref<1x2xf32, #tpu.memory_space<vmem>>, vector<1x2xf32>
    %168 = vector.broadcast %167 : vector<1x2xf32> to vector<64x2xf32>
    %169 = arith.addf %166, %168 : vector<64x2xf32>
    %c0_109 = arith.constant 0 : index
    %c0_110 = arith.constant 0 : index
    %c0_111 = arith.constant 0 : index
    %170 = vector.load %arg11[%c0_109, %c0_110, %c0_111] : memref<1x64x2xf32, #tpu.memory_space<vmem>>, vector<1x64x2xf32>
    %171 = vector.shape_cast %170 : vector<1x64x2xf32> to vector<64x2xf32>
    %172 = vector.shape_cast %169 : vector<64x2xf32> to vector<1x64x2xf32>
    tpu.vector_store %arg11[%c0_109, %c0_110, %c0_111], %172 {strides = array<i32>} : memref<1x64x2xf32, #tpu.memory_space<vmem>>, vector<1x64x2xf32>,
    return
  }
  func.func @transform_1(%arg0: i32, %arg1: memref<64xi32, #tpu.memory_space<smem>>) -> (i32, i32) {
    %c0_i32 = arith.constant 0 : i32
    %c0_i32_0 = arith.constant 0 : i32
    %c0_i32_1 = arith.constant 0 : i32
    return %c0_i32, %c0_i32_0 : i32, i32
  }
  func.func @transform_2(%arg0: i32, %arg1: memref<64xi32, #tpu.memory_space<smem>>) -> (i32, i32) {
    %c0_i32 = arith.constant 0 : i32
    %c0_i32_0 = arith.constant 0 : i32
    %c0_i32_1 = arith.constant 0 : i32
    return %c0_i32, %c0_i32_0 : i32, i32
  }
  func.func @transform_3(%arg0: i32, %arg1: memref<64xi32, #tpu.memory_space<smem>>) -> (i32, i32) {
    %c0_i32 = arith.constant 0 : i32
    %c0_i32_0 = arith.constant 0 : i32
    %c0_i32_1 = arith.constant 0 : i32
    return %c0_i32, %c0_i32_0 : i32, i32
  }
  func.func @transform_4(%arg0: i32, %arg1: memref<64xi32, #tpu.memory_space<smem>>) -> (i32, i32) {
    %c0_i32 = arith.constant 0 : i32
    %c0_i32_0 = arith.constant 0 : i32
    %c0_i32_1 = arith.constant 0 : i32
    return %c0_i32, %c0_i32_0 : i32, i32
  }
  func.func @transform_5(%arg0: i32, %arg1: memref<64xi32, #tpu.memory_space<smem>>) -> (i32, i32) {
    %c0_i32 = arith.constant 0 : i32
    %c0_i32_0 = arith.constant 0 : i32
    %c0_i32_1 = arith.constant 0 : i32
    return %c0_i32, %c0_i32_0 : i32, i32
  }
  func.func @transform_6(%arg0: i32, %arg1: memref<64xi32, #tpu.memory_space<smem>>) -> (i32, i32) {
    %c0_i32 = arith.constant 0 : i32
    %c0_i32_0 = arith.constant 0 : i32
    %c0_i32_1 = arith.constant 0 : i32
    return %c0_i32, %c0_i32_0 : i32, i32
  }
  func.func @transform_7(%arg0: i32, %arg1: memref<64xi32, #tpu.memory_space<smem>>) -> (i32, i32) {
    %c0_i32 = arith.constant 0 : i32
    %c0_i32_0 = arith.constant 0 : i32
    %c0_i32_1 = arith.constant 0 : i32
    return %c0_i32, %c0_i32_0 : i32, i32
  }
  func.func @transform_8(%arg0: i32, %arg1: memref<64xi32, #tpu.memory_space<smem>>) -> (i32, i32) {
    %c0_i32 = arith.constant 0 : i32
    %c0_i32_0 = arith.constant 0 : i32
    %c0_i32_1 = arith.constant 0 : i32
    return %c0_i32, %c0_i32_0 : i32, i32
  }
  func.func @transform_9(%arg0: i32, %arg1: memref<64xi32, #tpu.memory_space<smem>>) -> (i32, i32, i32) {
    %c0_i32 = arith.constant 0 : i32
    %c0_i32_0 = arith.constant 0 : i32
    %c0_i32_1 = arith.constant 0 : i32
    return %arg0, %c0_i32, %c0_i32_0 : i32, i32, i32
  }
}

</mosaic_0001>

<llo_original>
// kernel: tpu_custom_call.1
$region0: #{tpu_custom_call.1}
  #allocation0 [shape = 'u32[]', space=smem, size = 0x4, offset = 0x4, fixed_abs, tag = 'smem constant byte address 0x4 - core index']
  #allocation1 [shape = 'u32[144,128]{1,0:T(1,128)}', space=vmem, size = 0x12000, scoped, tag = 'internal scratch']
  #allocation2 [shape = 'f32[64,32]{1,0:T(8,128)}', space=vmem, size = 0x8000, scoped, tag = 'scratch operand']
  #allocation3 [shape = 'f32[64,32]{1,0:T(8,128)}', space=vmem, size = 0x8000, scoped, tag = 'scratch operand']
  #allocation4 [shape = 'f32[64,32]{1,0:T(8,128)}', space=vmem, size = 0x8000, scoped, tag = 'scratch operand']
  #allocation5 [shape = 's32[1]{0}', space=sflag, size = 0x4, scoped, tag = 'scratch operand']
  #allocation6 [shape = 's32[1]{0}', space=sflag, size = 0x4, scoped, tag = 'scoped memory for tpu_custom_call.1']
  #allocation7 [shape = 'u8[512]{0}', space=smem, size = 0x200, scoped, tag = 'prefetched SMEM operand 0']
  #allocation13 [shape = 's32[]', space=sflag, size = 0x4, offset = 0, fixed_abs, tag = 'sflag constant byte address 0x0 - dummy sync flag']
  #allocation14 [shape = 's32[]', space=sflag, size = 0x4, offset = 0, fixed_abs, tag = 'sflag constant byte address 0x0 - dummy sync flag']
  #allocation15 [shape = 'u32[]', space=smem, size = 0x4, offset = 0x44, fixed_abs, tag = 'smem constant byte address 0x44 - assertion arg 0']
  #allocation16 [shape = 'u32[]', space=smem, size = 0x4, offset = 0x48, fixed_abs, tag = 'smem constant byte address 0x48 - assertion arg 1']
  %s0 = inlined_call_operand.vmem [shape: s32[64], index: 0, kind: input, shape index: {}]
  %s1 = inlined_call_operand.hbm [shape: f32[21,32], index: 1, kind: input, shape index: {}]
  %s2 = inlined_call_operand.vmem [shape: f32[32,32], index: 2, kind: input, shape index: {}]
  %s3 = inlined_call_operand.hbm [shape: f32[32,32], index: 3, kind: input, shape index: {}]
  %s4 = inlined_call_operand.vmem [shape: f32[1,32], index: 4, kind: input, shape index: {}]
  %s5 = inlined_call_operand.hbm [shape: f32[32,32], index: 5, kind: input, shape index: {}]
  %s6 = inlined_call_operand.hbm [shape: f32[32,32], index: 6, kind: input, shape index: {}]
  %s7 = inlined_call_operand.vmem [shape: f32[1,32], index: 7, kind: input, shape index: {}]
  %s8 = inlined_call_operand.vmem [shape: f32[32,2], index: 8, kind: input, shape index: {}]
  %s9 = inlined_call_operand.vmem [shape: f32[1,2], index: 9, kind: input, shape index: {}]
  %s10 = inlined_call_operand.vmem [shape: f32[1,64,2], index: 10, kind: output, shape index: {}]
  %s11 = sld [smem:[#allocation0]]
  $region72: #{tpu_custom_call.1} parent=0
    _
  %s13 = ssub.s32 1, %s11
  %s14 = scalar_select 0, %s13, %s11
  %s15 = sshll.u32 %s0, 4
  %s16 = int_to_ptr.vmem [resolvable:$true] %s15
  %18 = dma.vmem_to_smem %s16, 16, [#allocation7], [#allocation6]
  %19 = dma.done [#allocation6], 16
  %20 = sfence
  $region1: #{tpu_custom_call.1} parent=0
    #allocation8 [shape = 'u8[16384]{0}', space=vmem, size = 0x4000, scoped, tag = 'input window, operand 3, single buffered']
    #allocation9 [shape = 's32[1]{0}', space=sflag, size = 0x4, scoped, tag = 'scoped memory for tpu_custom_call.1']
    #allocation10 [shape = 'u8[16384]{0}', space=vmem, size = 0x4000, scoped, tag = 'input window, operand 5, single buffered']
    #allocation11 [shape = 's32[1]{0}', space=sflag, size = 0x4, scoped, tag = 'scoped memory for tpu_custom_call.1']
    #allocation12 [shape = 'u8[16384]{0}', space=vmem, size = 0x4000, scoped, tag = 'input window, operand 6, single buffered']
    %21 = vsyncpa [#allocation9], 0
    %22 = vsyncpa [#allocation11], 0
    // Predicated region
    $region2: #{tpu_custom_call.1} parent=1 // pred_check
      _
    $region3: #{tpu_custom_call.1} parent=1 // pred_check_branch
      %24 = sbr.rel (0) target = $region5
    $region4: #{tpu_custom_call.1} parent=1 // pred_region
      _
    $region5: #{tpu_custom_call.1} parent=1 // pred_fallthru
      _
    // Predicated region
    $region6: #{tpu_custom_call.1} parent=1 // pred_check
      _
    $region7: #{tpu_custom_call.1} parent=1 // pred_check_branch
      %26 = sbr.rel (0) target = $region9
    $region8: #{tpu_custom_call.1} parent=1 // pred_region
      %s28 = ssub.s32 512, 512
      %29 = vsyncadd [#allocation9], %s28
      %s30 = sshll.u32 [#allocation8], 4
      %s31 = int_to_ptr.vmem [resolvable:$true] %s30
      %36 = dma.hbm_to_vmem [thread:$0]  %s3, 512, %s31, [#allocation9], 128, 128, 8
    $region9: #{tpu_custom_call.1} parent=1 // pred_fallthru
      _
    // Predicated region
    $region10: #{tpu_custom_call.1} parent=1 // pred_check
      _
    $region11: #{tpu_custom_call.1} parent=1 // pred_check_branch
      %38 = sbr.rel (0) target = $region13
    $region12: #{tpu_custom_call.1} parent=1 // pred_region
      _
    $region13: #{tpu_custom_call.1} parent=1 // pred_fallthru
      _
    // Predicated region
    $region14: #{tpu_custom_call.1} parent=1 // pred_check
      _
    $region15: #{tpu_custom_call.1} parent=1 // pred_check_branch
      %40 = sbr.rel (0) target = $region17
    $region16: #{tpu_custom_call.1} parent=1 // pred_region
      %s42 = ssub.s32 512, 512
      %43 = vsyncadd [#allocation11], %s42
      %s44 = sshll.u32 [#allocation10], 4
      %s45 = int_to_ptr.vmem [resolvable:$true] %s44
      %50 = dma.hbm_to_vmem [thread:$0]  %s5, 512, %s45, [#allocation11], 128, 128, 8
    $region17: #{tpu_custom_call.1} parent=1 // pred_fallthru
      _
    // Predicated region
    $region18: #{tpu_custom_call.1} parent=1 // pred_check
      _
    $region19: #{tpu_custom_call.1} parent=1 // pred_check_branch
      %52 = sbr.rel (0) target = $region21
    $region20: #{tpu_custom_call.1} parent=1 // pred_region
      %s54 = ssub.s32 512, 512
      %55 = vsyncadd [#allocation11], %s54
      %s56 = sshll.u32 [#allocation12], 4
      %s57 = int_to_ptr.vmem [resolvable:$true] %s56
      %62 = dma.hbm_to_vmem [thread:$0]  %s6, 512, %s57, [#allocation11], 128, 128, 8
    $region21: #{tpu_custom_call.1} parent=1 // pred_fallthru
      _
    // Predicated region
    $region22: #{tpu_custom_call.1} parent=1 // pred_check
      _
    $region23: #{tpu_custom_call.1} parent=1 // pred_check_branch
      %64 = sbr.rel (0) target = $region25
    $region24: #{tpu_custom_call.1} parent=1 // pred_region
      _
    $region25: #{tpu_custom_call.1} parent=1 // pred_fallthru
      _
    // Predicated region
    $region26: #{tpu_custom_call.1} parent=1 // pred_check
      _
    $region27: #{tpu_custom_call.1} parent=1 // pred_check_branch
      %66 = sbr.rel (0) target = $region29
    $region28: #{tpu_custom_call.1} parent=1 // pred_region
      _
    $region29: #{tpu_custom_call.1} parent=1 // pred_fallthru
      _
    // Predicated region
    $region30: #{tpu_custom_call.1} parent=1 // pred_check
      _
    $region31: #{tpu_custom_call.1} parent=1 // pred_check_branch
      %68 = sbr.rel (0) target = $region33
    $region32: #{tpu_custom_call.1} parent=1 // pred_region
      _
    $region33: #{tpu_custom_call.1} parent=1 // pred_fallthru
      _
    // Predicated region
    $region34: #{tpu_custom_call.1} parent=1 // pred_check
      _
    $region35: #{tpu_custom_call.1} parent=1 // pred_check_branch
      %70 = sbr.rel (0) target = $region37
    $region36: #{tpu_custom_call.1} parent=1 // pred_region
      %71 = dma.done [#allocation9], 512
    $region37: #{tpu_custom_call.1} parent=1 // pred_fallthru
      _
    // Predicated region
    $region38: #{tpu_custom_call.1} parent=1 // pred_check
      _
    $region39: #{tpu_custom_call.1} parent=1 // pred_check_branch
      %73 = sbr.rel (0) target = $region41
    $region40: #{tpu_custom_call.1} parent=1 // pred_region
      %74 = dma.done [#allocation11], 512
    $region41: #{tpu_custom_call.1} parent=1 // pred_fallthru
      _
    // Predicated region
    $region42: #{tpu_custom_call.1} parent=1 // pred_check
      _
    $region43: #{tpu_custom_call.1} parent=1 // pred_check_branch
      %76 = sbr.rel (0) target = $region45
    $region44: #{tpu_custom_call.1} parent=1 // pred_region
      %77 = dma.done [#allocation11], 512
    $region45: #{tpu_custom_call.1} parent=1 // pred_fallthru
      _
    loop: start=0, step=1, limit=64
    $region46: #{tpu_custom_call.1} parent=1 // loop_pre_header
      _
    $region47: #{tpu_custom_call.1} parent=1 // loop_header
      %s79 = sphi 0, %s83
      %p80 = scmp.ge.s32.totalorder %s79, 64
    $region48: #{tpu_custom_call.1} parent=1 // loop_header_branch
      %82 = sbr.rel (%p80) target = $region52
    $region49: #{tpu_custom_call.1} parent=1 // loop_body
      %s84 = smul.u32 0, 64
      %s85 = sadd.s32 %s84, %s79
      %s86 = sld [smem:[#allocation7 + %s85]]
      %s87 = smul.addr %s86, 16
      %s88 = scalar_lea.hbm %s1, %s87
      %s89 = scalar_lea.vmem [#allocation2], %s79
      // Predicated region
      $region53: #{tpu_custom_call.1} parent=49 // pred_check
        _
      $region54: #{tpu_custom_call.1} parent=49 // pred_check_branch
        %91 = sbr.rel target = $region56
      $region55: #{tpu_custom_call.1} parent=49 // pred_region
        %92 = sst [smem:[#allocation15]] [#allocation14]
        %93 = sst [smem:[#allocation16]] [#allocation13]
      $region56: #{tpu_custom_call.1} parent=49 // pred_fallthru
        _
      %95 = shalt.err (0)
      %s97 = sshll.u32 %s89, 4
      %s98 = int_to_ptr.vmem [resolvable:$true] %s97
      %100 = dma.hbm_to_vmem [thread:$0]  %s88, 16, %s98, [#allocation5]
    $region50: #{tpu_custom_call.1} parent=1 // loop_footer
      %s83 = sadd.s32 1, %s79
    $region51: #{tpu_custom_call.1} parent=1 // loop_footer_branch
      %78 = sbr.rel target = $region47
    $region52: #{tpu_custom_call.1} parent=1 // loop_exit
      _
    loop: start=0, step=1, limit=64
    $region57: #{tpu_custom_call.1} parent=1 // loop_pre_header
      _
    $region58: #{tpu_custom_call.1} parent=1 // loop_header
      %s102 = sphi 0, %s106
      %p103 = scmp.ge.s32.totalorder %s102, 64
    $region59: #{tpu_custom_call.1} parent=1 // loop_header_branch
      %105 = sbr.rel (%p103) target = $region63
    $region60: #{tpu_custom_call.1} parent=1 // loop_body
      %s107 = smul.u32 1, 1
      %s108 = sshll.u32 %s107, 4
      %109 = dma.done [#allocation5], %s108
    $region61: #{tpu_custom_call.1} parent=1 // loop_footer
      %s106 = sadd.s32 1, %s102
    $region62: #{tpu_custom_call.1} parent=1 // loop_footer_branch
      %101 = sbr.rel target = $region58
    $region63: #{tpu_custom_call.1} parent=1 // loop_exit
      _
    %v110 = vld [vmem:[#allocation8] sm:$0xff]
    %v111 = vld [vmem:[#allocation8 + $0x8] sm:$0xff]
    %v112 = vld [vmem:[#allocation8 + $0x10] sm:$0xff]
    %v113 = vld [vmem:[#allocation8 + $0x18] sm:$0xff]
    %v114 = vld [vmem:[#allocation2] sm:$0xff]
    %v115 = vld [vmem:[#allocation2 + $0x8] sm:$0xff]
    %v116 = vld [vmem:[#allocation2 + $0x10] sm:$0xff]
    %v117 = vld [vmem:[#allocation2 + $0x18] sm:$0xff]
    %v118 = vld [vmem:[#allocation2 + $0x20] sm:$0xff]
    %v119 = vld [vmem:[#allocation2 + $0x28] sm:$0xff]
    %v120 = vld [vmem:[#allocation2 + $0x30] sm:$0xff]
    %v121 = vld [vmem:[#allocation2 + $0x38] sm:$0xff]
    %v122 = vld [vmem:[%s2] sm:$0xff]
    %v123 = vld [vmem:[%s2 + $0x8] sm:$0xff]
    %v124 = vld [vmem:[%s2 + $0x10] sm:$0xff]
    %v125 = vld [vmem:[%s2 + $0x18] sm:$0xff]
    %v126 = vld [vmem:[%s4] sm:$0x1]
    %v128 = vlaneseq
    %v129 = vshrl.u32 %v128, 7
    %v130 = vsub.s32 0, %v129
    %v131 = vrot.slane %v126, %v130
    %vm133 = vcmask 261120
    %v135 = vsel %vm133, %v114, 0
    %v138 = vsel %vm133, %v115, 0
    %v141 = vsel %vm133, %v116, 0
    %v144 = vsel %vm133, %v117, 0
    %v147 = vsel %vm133, %v118, 0
    %v150 = vsel %vm133, %v119, 0
    %v153 = vsel %vm133, %v120, 0
    %v156 = vsel %vm133, %v121, 0
    %158 = vmatprep.subr.mxu0 0.0
    %159 = vmatpush1.msra.mxu0 %v122
    %160 = vmatprep.subr.mxu0 0.0
    %161 = vmatpush1.msra.mxu0 %v123
    %162 = vmatprep.subr.mxu0 0.0
    %163 = vmatpush1.msra.mxu0 %v124
    %164 = vmatprep.subr.mxu0 0.0
    %165 = vmatpush1.msra.mxu0 %v125
    %166 = vmatprep.subr.mxu0 0.0
    %167 = vmatpush1.msra.mxu0 0.0
    %168 = vmatprep.subr.mxu0 0.0
    %169 = vmatpush1.msra.mxu0 0.0
    %170 = vmatprep.subr.mxu0 0.0
    %171 = vmatpush1.msra.mxu0 0.0
    %172 = vmatprep.subr.mxu0 0.0
    %173 = vmatpush1.msra.mxu0 0.0
    %174 = vmatprep.subr.mxu0 0.0
    %175 = vmatpush1.msra.mxu0 0.0
    %176 = vmatprep.subr.mxu0 0.0
    %177 = vmatpush1.msra.mxu0 0.0
    %178 = vmatprep.subr.mxu0 0.0
    %179 = vmatpush1.msra.mxu0 0.0
    %180 = vmatprep.subr.mxu0 0.0
    %181 = vmatpush1.msra.mxu0 0.0
    %182 = vmatprep.subr.mxu0 0.0
    %183 = vmatpush1.msra.mxu0 0.0
    %184 = vmatprep.subr.mxu0 0.0
    %185 = vmatpush1.msra.mxu0 0.0
    %186 = vmatprep.subr.mxu0 0.0
    %187 = vmatpush1.msra.mxu0 0.0
    %188 = vmatprep.subr.mxu0 0.0
    %189 = vmatpush1.msra.mxu0 0.0
    %190 = vmatprep.subr.mxu0 0.0
    %191 = vmatpush1.msra.mxu0 0.0
    %192 = vmatprep.subr.mxu0 0.0
    %193 = vmatpush1.msra.mxu0 0.0
    %194 = vmatprep.subr.mxu0 0.0
    %195 = vmatpush1.msra.mxu0 0.0
    %196 = vmatprep.subr.mxu0 0.0
    %197 = vmatpush1.msra.mxu0 0.0
    %198 = vmatprep.subr.mxu0 0.0
    %199 = vmatpush1.msra.mxu0 0.0
    %200 = vmatprep.subr.mxu0 0.0
    %201 = vmatpush1.msra.mxu0 0.0
    %202 = vmatprep.subr.mxu0 0.0
    %203 = vmatpush1.msra.mxu0 0.0
    %204 = vmatprep.subr.mxu0 0.0
    %205 = vmatpush1.msra.mxu0 0.0
    %206 = vmatprep.subr.mxu0 0.0
    %207 = vmatpush1.msra.mxu0 0.0
    %208 = vmatprep.subr.mxu0 0.0
    %209 = vmatpush1.msra.mxu0 0.0
    %210 = vmatprep.subr.mxu0 0.0
    %211 = vmatpush1.msra.mxu0 0.0
    %212 = vmatprep.subr.mxu0 0.0
    %213 = vmatpush1.msra.mxu0 0.0
    %214 = vmatprep.subr.mxu0 0.0
    %215 = vmatpush1.msra.mxu0 0.0
    %216 = vmatprep.subr.mxu0 0.0
    %217 = vmatpush1.msra.mxu0 0.0
    %218 = vmatprep.subr.mxu0 0.0
    %219 = vmatpush1.msra.mxu0 0.0
    %220 = vmatprep.subr.mxu0 0.0
    %221 = vmatpush1.msra.mxu0 0.0
    %222 = vmatprep.mubr.f32.mxu0 0.0
    %223 = vmatmul.mubr.f32.gmra.mrb[0].mxu0 %v135
    %v224 = vpop.f32.mrb[0].mxu0
    %v225 = vadd.f32 %v131, %v224
    %v226 = vpop.f32.mrb[0].mxu0
    %227 = vmatprep.mubr.f32.mxu0 0.0
    %228 = vmatmul.mubr.f32.gmra.mrb[0].mxu0 %v138
    %v229 = vpop.f32.mrb[0].mxu0
    %v230 = vadd.f32 %v131, %v229
    %v231 = vpop.f32.mrb[0].mxu0
    %232 = vmatprep.mubr.f32.mxu0 0.0
    %233 = vmatmul.mubr.f32.gmra.mrb[0].mxu0 %v141
    %v234 = vpop.f32.mrb[0].mxu0
    %v235 = vadd.f32 %v131, %v234
    %v236 = vpop.f32.mrb[0].mxu0
    %237 = vmatprep.mubr.f32.mxu0 0.0
    %238 = vmatmul.mubr.f32.gmra.mrb[0].mxu0 %v144
    %v239 = vpop.f32.mrb[0].mxu0
    %v240 = vadd.f32 %v131, %v239
    %v241 = vpop.f32.mrb[0].mxu0
    %242 = vmatprep.mubr.f32.mxu0 0.0
    %243 = vmatmul.mubr.f32.gmra.mrb[0].mxu0 %v147
    %v244 = vpop.f32.mrb[0].mxu0
    %v245 = vadd.f32 %v131, %v244
    %v246 = vpop.f32.mrb[0].mxu0
    %247 = vmatprep.mubr.f32.mxu0 0.0
    %248 = vmatmul.mubr.f32.gmra.mrb[0].mxu0 %v150
    %v249 = vpop.f32.mrb[0].mxu0
    %v250 = vadd.f32 %v131, %v249
    %v251 = vpop.f32.mrb[0].mxu0
    %252 = vmatprep.mubr.f32.mxu0 0.0
    %253 = vmatmul.mubr.f32.gmra.mrb[0].mxu0 %v153
    %v254 = vpop.f32.mrb[0].mxu0
    %v255 = vadd.f32 %v131, %v254
    %v256 = vpop.f32.mrb[0].mxu0
    %257 = vmatprep.mubr.f32.mxu0 0.0
    %258 = vmatmul.mubr.f32.gmra.mrb[0].mxu0 %v156
    %v259 = vpop.f32.mrb[0].mxu0
    %v260 = vadd.f32 %v131, %v259
    %v261 = vpop.f32.mrb[0].mxu0
    %262 = vdwg.mxu0
    %263 = vst.msk [vmem:[#allocation3] sm:$0xff] %vm133, %v225
    %264 = vst.msk [vmem:[#allocation3 + $0x8] sm:$0xff] %vm133, %v230
    %265 = vst.msk [vmem:[#allocation3 + $0x10] sm:$0xff] %vm133, %v235
    %266 = vst.msk [vmem:[#allocation3 + $0x18] sm:$0xff] %vm133, %v240
    %267 = vst.msk [vmem:[#allocation3 + $0x20] sm:$0xff] %vm133, %v245
    %268 = vst.msk [vmem:[#allocation3 + $0x28] sm:$0xff] %vm133, %v250
    %269 = vst.msk [vmem:[#allocation3 + $0x30] sm:$0xff] %vm133, %v255
    %270 = vst.msk [vmem:[#allocation3 + $0x38] sm:$0xff] %vm133, %v260
    %v271 = vld [vmem:[#allocation3] sm:$0xff]
    %v273 = vsel %vm133, 0.0, 0
    %275 = vmatprep.subr.mxu0 0.0
    %276 = vmatpush1.msra.mxu0 %v110
    %277 = vmatprep.subr.mxu0 0.0
    %278 = vmatpush1.msra.mxu0 %v111
    %279 = vmatprep.subr.mxu0 0.0
    %280 = vmatpush1.msra.mxu0 %v112
    %281 = vmatprep.subr.mxu0 0.0
    %282 = vmatpush1.msra.mxu0 %v113
    %283 = vmatprep.subr.mxu0 0.0
    %284 = vmatpush1.msra.mxu0 0.0
    %285 = vmatprep.subr.mxu0 0.0
    %286 = vmatpush1.msra.mxu0 0.0
    %287 = vmatprep.subr.mxu0 0.0
    %288 = vmatpush1.msra.mxu0 0.0
    %289 = vmatprep.subr.mxu0 0.0
    %290 = vmatpush1.msra.mxu0 0.0
    %291 = vmatprep.subr.mxu0 0.0
    %292 = vmatpush1.msra.mxu0 0.0
    %293 = vmatprep.subr.mxu0 0.0
    %294 = vmatpush1.msra.mxu0 0.0
    %295 = vmatprep.subr.mxu0 0.0
    %296 = vmatpush1.msra.mxu0 0.0
    %297 = vmatprep.subr.mxu0 0.0
    %298 = vmatpush1.msra.mxu0 0.0
    %299 = vmatprep.subr.mxu0 0.0
    %300 = vmatpush1.msra.mxu0 0.0
    %301 = vmatprep.subr.mxu0 0.0
    %302 = vmatpush1.msra.mxu0 0.0
    %303 = vmatprep.subr.mxu0 0.0
    %304 = vmatpush1.msra.mxu0 0.0
    %305 = vmatprep.subr.mxu0 0.0
    %306 = vmatpush1.msra.mxu0 0.0
    %307 = vmatprep.subr.mxu0 0.0
    %308 = vmatpush1.msra.mxu0 0.0
    %309 = vmatprep.subr.mxu0 0.0
    %310 = vmatpush1.msra.mxu0 0.0
    %311 = vmatprep.subr.mxu0 0.0
    %312 = vmatpush1.msra.mxu0 0.0
    %313 = vmatprep.subr.mxu0 0.0
    %314 = vmatpush1.msra.mxu0 0.0
    %315 = vmatprep.subr.mxu0 0.0
    %316 = vmatpush1.msra.mxu0 0.0
    %317 = vmatprep.subr.mxu0 0.0
    %318 = vmatpush1.msra.mxu0 0.0
    %319 = vmatprep.subr.mxu0 0.0
    %320 = vmatpush1.msra.mxu0 0.0
    %321 = vmatprep.subr.mxu0 0.0
    %322 = vmatpush1.msra.mxu0 0.0
    %323 = vmatprep.subr.mxu0 0.0
    %324 = vmatpush1.msra.mxu0 0.0
    %325 = vmatprep.subr.mxu0 0.0
    %326 = vmatpush1.msra.mxu0 0.0
    %327 = vmatprep.subr.mxu0 0.0
    %328 = vmatpush1.msra.mxu0 0.0
    %329 = vmatprep.subr.mxu0 0.0
    %330 = vmatpush1.msra.mxu0 0.0
    %331 = vmatprep.subr.mxu0 0.0
    %332 = vmatpush1.msra.mxu0 0.0
    %333 = vmatprep.subr.mxu0 0.0
    %334 = vmatpush1.msra.mxu0 0.0
    %335 = vmatprep.subr.mxu0 0.0
    %336 = vmatpush1.msra.mxu0 0.0
    %337 = vmatprep.subr.mxu0 0.0
    %338 = vmatpush1.msra.mxu0 0.0
    %339 = vmatprep.mubr.f32.mxu0 0.0
    %340 = vmatmul.mubr.f32.gmra.mrb[0].mxu0 %v273
    %v341 = vpop.f32.mrb[0].mxu0
    %v342 = vadd.f32 0.0, %v341
    %v343 = vpop.f32.mrb[0].mxu0
    %344 = vdwg.mxu0
    %v345 = vadd.f32 %v271, %v342
    %v346 = vtanh.pop %v345
    %347 = vst.msk [vmem:[#allocation3] sm:$0xff] %vm133, %v346
    %s348 = scalar_lea.vmem [#allocation3], 8
    %v349 = vld [vmem:[%s348] sm:$0xff]
    %v351 = vsel %vm133, %v346, 0
    %353 = vmatprep.subr.mxu0 0.0
    %354 = vmatpush1.msra.mxu0 %v110
    %355 = vmatprep.subr.mxu0 0.0
    %356 = vmatpush1.msra.mxu0 %v111
    %357 = vmatprep.subr.mxu0 0.0
    %358 = vmatpush1.msra.mxu0 %v112
    %359 = vmatprep.subr.mxu0 0.0
    %360 = vmatpush1.msra.mxu0 %v113
    %361 = vmatprep.subr.mxu0 0.0
    %362 = vmatpush1.msra.mxu0 0.0
    %363 = vmatprep.subr.mxu0 0.0
    %364 = vmatpush1.msra.mxu0 0.0
    %365 = vmatprep.subr.mxu0 0.0
    %366 = vmatpush1.msra.mxu0 0.0
    %367 = vmatprep.subr.mxu0 0.0
    %368 = vmatpush1.msra.mxu0 0.0
    %369 = vmatprep.subr.mxu0 0.0
    %370 = vmatpush1.msra.mxu0 0.0
    %371 = vmatprep.subr.mxu0 0.0
    %372 = vmatpush1.msra.mxu0 0.0
    %373 = vmatprep.subr.mxu0 0.0
    %374 = vmatpush1.msra.mxu0 0.0
    %375 = vmatprep.subr.mxu0 0.0
    %376 = vmatpush1.msra.mxu0 0.0
    %377 = vmatprep.subr.mxu0 0.0
    %378 = vmatpush1.msra.mxu0 0.0
    %379 = vmatprep.subr.mxu0 0.0
    %380 = vmatpush1.msra.mxu0 0.0
    %381 = vmatprep.subr.mxu0 0.0
    %382 = vmatpush1.msra.mxu0 0.0
    %383 = vmatprep.subr.mxu0 0.0
    %384 = vmatpush1.msra.mxu0 0.0
    %385 = vmatprep.subr.mxu0 0.0
    %386 = vmatpush1.msra.mxu0 0.0
    %387 = vmatprep.subr.mxu0 0.0
    %388 = vmatpush1.msra.mxu0 0.0
    %389 = vmatprep.subr.mxu0 0.0
    %390 = vmatpush1.msra.mxu0 0.0
    %391 = vmatprep.subr.mxu0 0.0
    %392 = vmatpush1.msra.mxu0 0.0
    %393 = vmatprep.subr.mxu0 0.0
    %394 = vmatpush1.msra.mxu0 0.0
    %395 = vmatprep.subr.mxu0 0.0
    %396 = vmatpush1.msra.mxu0 0.0
    %397 = vmatprep.subr.mxu0 0.0
    %398 = vmatpush1.msra.mxu0 0.0
    %399 = vmatprep.subr.mxu0 0.0
    %400 = vmatpush1.msra.mxu0 0.0
    %401 = vmatprep.subr.mxu0 0.0
    %402 = vmatpush1.msra.mxu0 0.0
    %403 = vmatprep.subr.mxu0 0.0
    %404 = vmatpush1.msra.mxu0 0.0
    %405 = vmatprep.subr.mxu0 0.0
    %406 = vmatpush1.msra.mxu0 0.0
    %407 = vmatprep.subr.mxu0 0.0
    %408 = vmatpush1.msra.mxu0 0.0
    %409 = vmatprep.subr.mxu0 0.0
    %410 = vmatpush1.msra.mxu0 0.0
    %411 = vmatprep.subr.mxu0 0.0
    %412 = vmatpush1.msra.mxu0 0.0
    %413 = vmatprep.subr.mxu0 0.0
    %414 = vmatpush1.msra.mxu0 0.0
    %415 = vmatprep.subr.mxu0 0.0
    %416 = vmatpush1.msra.mxu0 0.0
    %417 = vmatprep.mubr.f32.mxu0 0.0
    %418 = vmatmul.mubr.f32.gmra.mrb[0].mxu0 %v351
    %v419 = vpop.f32.mrb[0].mxu0
    %v420 = vadd.f32 0.0, %v419
    %v421 = vpop.f32.mrb[0].mxu0
    %422 = vdwg.mxu0
    %v423 = vadd.f32 %v349, %v420
    %v424 = vtanh.pop %v423
    %425 = vst.msk [vmem:[%s348] sm:$0xff] %vm133, %v424
    %s426 = scalar_lea.vmem [#allocation3], 16
    %v427 = vld [vmem:[%s426] sm:$0xff]
    %v429 = vsel %vm133, %v424, 0
    %431 = vmatprep.subr.mxu0 0.0
    %432 = vmatpush1.msra.mxu0 %v110
    %433 = vmatprep.subr.mxu0 0.0
    %434 = vmatpush1.msra.mxu0 %v111
    %435 = vmatprep.subr.mxu0 0.0
    %436 = vmatpush1.msra.mxu0 %v112
    %437 = vmatprep.subr.mxu0 0.0
    %438 = vmatpush1.msra.mxu0 %v113
    %439 = vmatprep.subr.mxu0 0.0
    %440 = vmatpush1.msra.mxu0 0.0
    %441 = vmatprep.subr.mxu0 0.0
    %442 = vmatpush1.msra.mxu0 0.0
    %443 = vmatprep.subr.mxu0 0.0
    %444 = vmatpush1.msra.mxu0 0.0
    %445 = vmatprep.subr.mxu0 0.0
    %446 = vmatpush1.msra.mxu0 0.0
    %447 = vmatprep.subr.mxu0 0.0
    %448 = vmatpush1.msra.mxu0 0.0
    %449 = vmatprep.subr.mxu0 0.0
    %450 = vmatpush1.msra.mxu0 0.0
    %451 = vmatprep.subr.mxu0 0.0
    %452 = vmatpush1.msra.mxu0 0.0
    %453 = vmatprep.subr.mxu0 0.0
    %454 = vmatpush1.msra.mxu0 0.0
    %455 = vmatprep.subr.mxu0 0.0
    %456 = vmatpush1.msra.mxu0 0.0
    %457 = vmatprep.subr.mxu0 0.0
    %458 = vmatpush1.msra.mxu0 0.0
    %459 = vmatprep.subr.mxu0 0.0
    %460 = vmatpush1.msra.mxu0 0.0
    %461 = vmatprep.subr.mxu0 0.0
    %462 = vmatpush1.msra.mxu0 0.0
    %463 = vmatprep.subr.mxu0 0.0
    %464 = vmatpush1.msra.mxu0 0.0
    %465 = vmatprep.subr.mxu0 0.0
    %466 = vmatpush1.msra.mxu0 0.0
    %467 = vmatprep.subr.mxu0 0.0
    %468 = vmatpush1.msra.mxu0 0.0
    %469 = vmatprep.subr.mxu0 0.0
    %470 = vmatpush1.msra.mxu0 0.0
    %471 = vmatprep.subr.mxu0 0.0
    %472 = vmatpush1.msra.mxu0 0.0
    %473 = vmatprep.subr.mxu0 0.0
    %474 = vmatpush1.msra.mxu0 0.0
    %475 = vmatprep.subr.mxu0 0.0
    %476 = vmatpush1.msra.mxu0 0.0
    %477 = vmatprep.subr.mxu0 0.0
    %478 = vmatpush1.msra.mxu0 0.0
    %479 = vmatprep.subr.mxu0 0.0
    %480 = vmatpush1.msra.mxu0 0.0
    %481 = vmatprep.subr.mxu0 0.0
    %482 = vmatpush1.msra.mxu0 0.0
    %483 = vmatprep.subr.mxu0 0.0
    %484 = vmatpush1.msra.mxu0 0.0
    %485 = vmatprep.subr.mxu0 0.0
    %486 = vmatpush1.msra.mxu0 0.0
    %487 = vmatprep.subr.mxu0 0.0
    %488 = vmatpush1.msra.mxu0 0.0
    %489 = vmatprep.subr.mxu0 0.0
    %490 = vmatpush1.msra.mxu0 0.0
    %491 = vmatprep.subr.mxu0 0.0
    %492 = vmatpush1.msra.mxu0 0.0
    %493 = vmatprep.subr.mxu0 0.0
    %494 = vmatpush1.msra.mxu0 0.0
    %495 = vmatprep.mubr.f32.mxu0 0.0
    %496 = vmatmul.mubr.f32.gmra.mrb[0].mxu0 %v429
    %v497 = vpop.f32.mrb[0].mxu0
    %v498 = vadd.f32 0.0, %v497
    %v499 = vpop.f32.mrb[0].mxu0
    %500 = vdwg.mxu0
    %v501 = vadd.f32 %v427, %v498
    %v502 = vtanh.pop %v501
    %503 = vst.msk [vmem:[%s426] sm:$0xff] %vm133, %v502
    %s504 = scalar_lea.vmem [#allocation3], 24
    %v505 = vld [vmem:[%s504] sm:$0xff]
    %v507 = vsel %vm133, %v502, 0
    %509 = vmatprep.subr.mxu0 0.0
    %510 = vmatpush1.msra.mxu0 %v110
    %511 = vmatprep.subr.mxu0 0.0
    %512 = vmatpush1.msra.mxu0 %v111
    %513 = vmatprep.subr.mxu0 0.0
    %514 = vmatpush1.msra.mxu0 %v112
    %515 = vmatprep.subr.mxu0 0.0
    %516 = vmatpush1.msra.mxu0 %v113
    %517 = vmatprep.subr.mxu0 0.0
    %518 = vmatpush1.msra.mxu0 0.0
    %519 = vmatprep.subr.mxu0 0.0
    %520 = vmatpush1.msra.mxu0 0.0
    %521 = vmatprep.subr.mxu0 0.0
    %522 = vmatpush1.msra.mxu0 0.0
    %523 = vmatprep.subr.mxu0 0.0
    %524 = vmatpush1.msra.mxu0 0.0
    %525 = vmatprep.subr.mxu0 0.0
    %526 = vmatpush1.msra.mxu0 0.0
    %527 = vmatprep.subr.mxu0 0.0
    %528 = vmatpush1.msra.mxu0 0.0
    %529 = vmatprep.subr.mxu0 0.0
    %530 = vmatpush1.msra.mxu0 0.0
    %531 = vmatprep.subr.mxu0 0.0
    %532 = vmatpush1.msra.mxu0 0.0
    %533 = vmatprep.subr.mxu0 0.0
    %534 = vmatpush1.msra.mxu0 0.0
    %535 = vmatprep.subr.mxu0 0.0
    %536 = vmatpush1.msra.mxu0 0.0
    %537 = vmatprep.subr.mxu0 0.0
    %538 = vmatpush1.msra.mxu0 0.0
    %539 = vmatprep.subr.mxu0 0.0
    %540 = vmatpush1.msra.mxu0 0.0
    %541 = vmatprep.subr.mxu0 0.0
    %542 = vmatpush1.msra.mxu0 0.0
    %543 = vmatprep.subr.mxu0 0.0
    %544 = vmatpush1.msra.mxu0 0.0
    %545 = vmatprep.subr.mxu0 0.0
    %546 = vmatpush1.msra.mxu0 0.0
    %547 = vmatprep.subr.mxu0 0.0
    %548 = vmatpush1.msra.mxu0 0.0
    %549 = vmatprep.subr.mxu0 0.0
    %550 = vmatpush1.msra.mxu0 0.0
    %551 = vmatprep.subr.mxu0 0.0
    %552 = vmatpush1.msra.mxu0 0.0
    %553 = vmatprep.subr.mxu0 0.0
    %554 = vmatpush1.msra.mxu0 0.0
    %555 = vmatprep.subr.mxu0 0.0
    %556 = vmatpush1.msra.mxu0 0.0
    %557 = vmatprep.subr.mxu0 0.0
    %558 = vmatpush1.msra.mxu0 0.0
    %559 = vmatprep.subr.mxu0 0.0
    %560 = vmatpush1.msra.mxu0 0.0
    %561 = vmatprep.subr.mxu0 0.0
    %562 = vmatpush1.msra.mxu0 0.0
    %563 = vmatprep.subr.mxu0 0.0
    %564 = vmatpush1.msra.mxu0 0.0
    %565 = vmatprep.subr.mxu0 0.0
    %566 = vmatpush1.msra.mxu0 0.0
    %567 = vmatprep.subr.mxu0 0.0
    %568 = vmatpush1.msra.mxu0 0.0
    %569 = vmatprep.subr.mxu0 0.0
    %570 = vmatpush1.msra.mxu0 0.0
    %571 = vmatprep.subr.mxu0 0.0
    %572 = vmatpush1.msra.mxu0 0.0
    %573 = vmatprep.mubr.f32.mxu0 0.0
    %574 = vmatmul.mubr.f32.gmra.mrb[0].mxu0 %v507
    %v575 = vpop.f32.mrb[0].mxu0
    %v576 = vadd.f32 0.0, %v575
    %v577 = vpop.f32.mrb[0].mxu0
    %578 = vdwg.mxu0
    %v579 = vadd.f32 %v505, %v576
    %v580 = vtanh.pop %v579
    %581 = vst.msk [vmem:[%s504] sm:$0xff] %vm133, %v580
    %s582 = scalar_lea.vmem [#allocation3], 32
    %v583 = vld [vmem:[%s582] sm:$0xff]
    %v585 = vsel %vm133, %v580, 0
    %587 = vmatprep.subr.mxu0 0.0
    %588 = vmatpush1.msra.mxu0 %v110
    %589 = vmatprep.subr.mxu0 0.0
    %590 = vmatpush1.msra.mxu0 %v111
    %591 = vmatprep.subr.mxu0 0.0
    %592 = vmatpush1.msra.mxu0 %v112
    %593 = vmatprep.subr.mxu0 0.0
    %594 = vmatpush1.msra.mxu0 %v113
    %595 = vmatprep.subr.mxu0 0.0
    %596 = vmatpush1.msra.mxu0 0.0
    %597 = vmatprep.subr.mxu0 0.0
    %598 = vmatpush1.msra.mxu0 0.0
    %599 = vmatprep.subr.mxu0 0.0
    %600 = vmatpush1.msra.mxu0 0.0
    %601 = vmatprep.subr.mxu0 0.0
    %602 = vmatpush1.msra.mxu0 0.0
    %603 = vmatprep.subr.mxu0 0.0
    %604 = vmatpush1.msra.mxu0 0.0
    %605 = vmatprep.subr.mxu0 0.0
    %606 = vmatpush1.msra.mxu0 0.0
    %607 = vmatprep.subr.mxu0 0.0
    %608 = vmatpush1.msra.mxu0 0.0
    %609 = vmatprep.subr.mxu0 0.0
    %610 = vmatpush1.msra.mxu0 0.0
    %611 = vmatprep.subr.mxu0 0.0
    %612 = vmatpush1.msra.mxu0 0.0
    %613 = vmatprep.subr.mxu0 0.0
    %614 = vmatpush1.msra.mxu0 0.0
    %615 = vmatprep.subr.mxu0 0.0
    %616 = vmatpush1.msra.mxu0 0.0
    %617 = vmatprep.subr.mxu0 0.0
    %618 = vmatpush1.msra.mxu0 0.0
    %619 = vmatprep.subr.mxu0 0.0
    %620 = vmatpush1.msra.mxu0 0.0
    %621 = vmatprep.subr.mxu0 0.0
    %622 = vmatpush1.msra.mxu0 0.0
    %623 = vmatprep.subr.mxu0 0.0
    %624 = vmatpush1.msra.mxu0 0.0
    %625 = vmatprep.subr.mxu0 0.0
    %626 = vmatpush1.msra.mxu0 0.0
    %627 = vmatprep.subr.mxu0 0.0
    %628 = vmatpush1.msra.mxu0 0.0
    %629 = vmatprep.subr.mxu0 0.0
    %630 = vmatpush1.msra.mxu0 0.0
    %631 = vmatprep.subr.mxu0 0.0
    %632 = vmatpush1.msra.mxu0 0.0
    %633 = vmatprep.subr.mxu0 0.0
    %634 = vmatpush1.msra.mxu0 0.0
    %635 = vmatprep.subr.mxu0 0.0
    %636 = vmatpush1.msra.mxu0 0.0
    %637 = vmatprep.subr.mxu0 0.0
    %638 = vmatpush1.msra.mxu0 0.0
    %639 = vmatprep.subr.mxu0 0.0
    %640 = vmatpush1.msra.mxu0 0.0
    %641 = vmatprep.subr.mxu0 0.0
    %642 = vmatpush1.msra.mxu0 0.0
    %643 = vmatprep.subr.mxu0 0.0
    %644 = vmatpush1.msra.mxu0 0.0
    %645 = vmatprep.subr.mxu0 0.0
    %646 = vmatpush1.msra.mxu0 0.0
    %647 = vmatprep.subr.mxu0 0.0
    %648 = vmatpush1.msra.mxu0 0.0
    %649 = vmatprep.subr.mxu0 0.0
    %650 = vmatpush1.msra.mxu0 0.0
    %651 = vmatprep.mubr.f32.mxu0 0.0
    %652 = vmatmul.mubr.f32.gmra.mrb[0].mxu0 %v585
    %v653 = vpop.f32.mrb[0].mxu0
    %v654 = vadd.f32 0.0, %v653
    %v655 = vpop.f32.mrb[0].mxu0
    %656 = vdwg.mxu0
    %v657 = vadd.f32 %v583, %v654
    %v658 = vtanh.pop %v657
    %659 = vst.msk [vmem:[%s582] sm:$0xff] %vm133, %v658
    %s660 = scalar_lea.vmem [#allocation3], 40
    %v661 = vld [vmem:[%s660] sm:$0xff]
    %v663 = vsel %vm133, %v658, 0
    %665 = vmatprep.subr.mxu0 0.0
    %666 = vmatpush1.msra.mxu0 %v110
    %667 = vmatprep.subr.mxu0 0.0
    %668 = vmatpush1.msra.mxu0 %v111
    %669 = vmatprep.subr.mxu0 0.0
    %670 = vmatpush1.msra.mxu0 %v112
    %671 = vmatprep.subr.mxu0 0.0
    %672 = vmatpush1.msra.mxu0 %v113
    %673 = vmatprep.subr.mxu0 0.0
    %674 = vmatpush1.msra.mxu0 0.0
    %675 = vmatprep.subr.mxu0 0.0
    %676 = vmatpush1.msra.mxu0 0.0
    %677 = vmatprep.subr.mxu0 0.0
    %678 = vmatpush1.msra.mxu0 0.0
    %679 = vmatprep.subr.mxu0 0.0
    %680 = vmatpush1.msra.mxu0 0.0
    %681 = vmatprep.subr.mxu0 0.0
    %682 = vmatpush1.msra.mxu0 0.0
    %683 = vmatprep.subr.mxu0 0.0
    %684 = vmatpush1.msra.mxu0 0.0
    %685 = vmatprep.subr.mxu0 0.0
    %686 = vmatpush1.msra.mxu0 0.0
    %687 = vmatprep.subr.mxu0 0.0
    %688 = vmatpush1.msra.mxu0 0.0
    %689 = vmatprep.subr.mxu0 0.0
    %690 = vmatpush1.msra.mxu0 0.0
    %691 = vmatprep.subr.mxu0 0.0
    %692 = vmatpush1.msra.mxu0 0.0
    %693 = vmatprep.subr.mxu0 0.0
    %694 = vmatpush1.msra.mxu0 0.0
    %695 = vmatprep.subr.mxu0 0.0
    %696 = vmatpush1.msra.mxu0 0.0
    %697 = vmatprep.subr.mxu0 0.0
    %698 = vmatpush1.msra.mxu0 0.0
    %699 = vmatprep.subr.mxu0 0.0
    %700 = vmatpush1.msra.mxu0 0.0
    %701 = vmatprep.subr.mxu0 0.0
    %702 = vmatpush1.msra.mxu0 0.0
    %703 = vmatprep.subr.mxu0 0.0
    %704 = vmatpush1.msra.mxu0 0.0
    %705 = vmatprep.subr.mxu0 0.0
    %706 = vmatpush1.msra.mxu0 0.0
    %707 = vmatprep.subr.mxu0 0.0
    %708 = vmatpush1.msra.mxu0 0.0
    %709 = vmatprep.subr.mxu0 0.0
    %710 = vmatpush1.msra.mxu0 0.0
    %711 = vmatprep.subr.mxu0 0.0
    %712 = vmatpush1.msra.mxu0 0.0
    %713 = vmatprep.subr.mxu0 0.0
    %714 = vmatpush1.msra.mxu0 0.0
    %715 = vmatprep.subr.mxu0 0.0
    %716 = vmatpush1.msra.mxu0 0.0
    %717 = vmatprep.subr.mxu0 0.0
    %718 = vmatpush1.msra.mxu0 0.0
    %719 = vmatprep.subr.mxu0 0.0
    %720 = vmatpush1.msra.mxu0 0.0
    %721 = vmatprep.subr.mxu0 0.0
    %722 = vmatpush1.msra.mxu0 0.0
    %723 = vmatprep.subr.mxu0 0.0
    %724 = vmatpush1.msra.mxu0 0.0
    %725 = vmatprep.subr.mxu0 0.0
    %726 = vmatpush1.msra.mxu0 0.0
    %727 = vmatprep.subr.mxu0 0.0
    %728 = vmatpush1.msra.mxu0 0.0
    %729 = vmatprep.mubr.f32.mxu0 0.0
    %730 = vmatmul.mubr.f32.gmra.mrb[0].mxu0 %v663
    %v731 = vpop.f32.mrb[0].mxu0
    %v732 = vadd.f32 0.0, %v731
    %v733 = vpop.f32.mrb[0].mxu0
    %734 = vdwg.mxu0
    %v735 = vadd.f32 %v661, %v732
    %v736 = vtanh.pop %v735
    %737 = vst.msk [vmem:[%s660] sm:$0xff] %vm133, %v736
    %s738 = scalar_lea.vmem [#allocation3], 48
    %v739 = vld [vmem:[%s738] sm:$0xff]
    %v741 = vsel %vm133, %v736, 0
    %743 = vmatprep.subr.mxu0 0.0
    %744 = vmatpush1.msra.mxu0 %v110
    %745 = vmatprep.subr.mxu0 0.0
    %746 = vmatpush1.msra.mxu0 %v111
    %747 = vmatprep.subr.mxu0 0.0
    %748 = vmatpush1.msra.mxu0 %v112
    %749 = vmatprep.subr.mxu0 0.0
    %750 = vmatpush1.msra.mxu0 %v113
    %751 = vmatprep.subr.mxu0 0.0
    %752 = vmatpush1.msra.mxu0 0.0
    %753 = vmatprep.subr.mxu0 0.0
    %754 = vmatpush1.msra.mxu0 0.0
    %755 = vmatprep.subr.mxu0 0.0
    %756 = vmatpush1.msra.mxu0 0.0
    %757 = vmatprep.subr.mxu0 0.0
    %758 = vmatpush1.msra.mxu0 0.0
    %759 = vmatprep.subr.mxu0 0.0
    %760 = vmatpush1.msra.mxu0 0.0
    %761 = vmatprep.subr.mxu0 0.0
    %762 = vmatpush1.msra.mxu0 0.0
    %763 = vmatprep.subr.mxu0 0.0
    %764 = vmatpush1.msra.mxu0 0.0
    %765 = vmatprep.subr.mxu0 0.0
    %766 = vmatpush1.msra.mxu0 0.0
    %767 = vmatprep.subr.mxu0 0.0
    %768 = vmatpush1.msra.mxu0 0.0
    %769 = vmatprep.subr.mxu0 0.0
    %770 = vmatpush1.msra.mxu0 0.0
    %771 = vmatprep.subr.mxu0 0.0
    %772 = vmatpush1.msra.mxu0 0.0
    %773 = vmatprep.subr.mxu0 0.0
    %774 = vmatpush1.msra.mxu0 0.0
    %775 = vmatprep.subr.mxu0 0.0
    %776 = vmatpush1.msra.mxu0 0.0
    %777 = vmatprep.subr.mxu0 0.0
    %778 = vmatpush1.msra.mxu0 0.0
    %779 = vmatprep.subr.mxu0 0.0
    %780 = vmatpush1.msra.mxu0 0.0
    %781 = vmatprep.subr.mxu0 0.0
    %782 = vmatpush1.msra.mxu0 0.0
    %783 = vmatprep.subr.mxu0 0.0
    %784 = vmatpush1.msra.mxu0 0.0
    %785 = vmatprep.subr.mxu0 0.0
    %786 = vmatpush1.msra.mxu0 0.0
    %787 = vmatprep.subr.mxu0 0.0
    %788 = vmatpush1.msra.mxu0 0.0
    %789 = vmatprep.subr.mxu0 0.0
    %790 = vmatpush1.msra.mxu0 0.0
    %791 = vmatprep.subr.mxu0 0.0
    %792 = vmatpush1.msra.mxu0 0.0
    %793 = vmatprep.subr.mxu0 0.0
    %794 = vmatpush1.msra.mxu0 0.0
    %795 = vmatprep.subr.mxu0 0.0
    %796 = vmatpush1.msra.mxu0 0.0
    %797 = vmatprep.subr.mxu0 0.0
    %798 = vmatpush1.msra.mxu0 0.0
    %799 = vmatprep.subr.mxu0 0.0
    %800 = vmatpush1.msra.mxu0 0.0
    %801 = vmatprep.subr.mxu0 0.0
    %802 = vmatpush1.msra.mxu0 0.0
    %803 = vmatprep.subr.mxu0 0.0
    %804 = vmatpush1.msra.mxu0 0.0
    %805 = vmatprep.subr.mxu0 0.0
    %806 = vmatpush1.msra.mxu0 0.0
    %807 = vmatprep.mubr.f32.mxu0 0.0
    %808 = vmatmul.mubr.f32.gmra.mrb[0].mxu0 %v741
    %v809 = vpop.f32.mrb[0].mxu0
    %v810 = vadd.f32 0.0, %v809
    %v811 = vpop.f32.mrb[0].mxu0
    %812 = vdwg.mxu0
    %v813 = vadd.f32 %v739, %v810
    %v814 = vtanh.pop %v813
    %815 = vst.msk [vmem:[%s738] sm:$0xff] %vm133, %v814
    %s816 = scalar_lea.vmem [#allocation3], 56
    %v817 = vld [vmem:[%s816] sm:$0xff]
    %v819 = vsel %vm133, %v814, 0
    %821 = vmatprep.subr.mxu0 0.0
    %822 = vmatpush1.msra.mxu0 %v110
    %823 = vmatprep.subr.mxu0 0.0
    %824 = vmatpush1.msra.mxu0 %v111
    %825 = vmatprep.subr.mxu0 0.0
    %826 = vmatpush1.msra.mxu0 %v112
    %827 = vmatprep.subr.mxu0 0.0
    %828 = vmatpush1.msra.mxu0 %v113
    %829 = vmatprep.subr.mxu0 0.0
    %830 = vmatpush1.msra.mxu0 0.0
    %831 = vmatprep.subr.mxu0 0.0
    %832 = vmatpush1.msra.mxu0 0.0
    %833 = vmatprep.subr.mxu0 0.0
    %834 = vmatpush1.msra.mxu0 0.0
    %835 = vmatprep.subr.mxu0 0.0
    %836 = vmatpush1.msra.mxu0 0.0
    %837 = vmatprep.subr.mxu0 0.0
    %838 = vmatpush1.msra.mxu0 0.0
    %839 = vmatprep.subr.mxu0 0.0
    %840 = vmatpush1.msra.mxu0 0.0
    %841 = vmatprep.subr.mxu0 0.0
    %842 = vmatpush1.msra.mxu0 0.0
    %843 = vmatprep.subr.mxu0 0.0
    %844 = vmatpush1.msra.mxu0 0.0
    %845 = vmatprep.subr.mxu0 0.0
    %846 = vmatpush1.msra.mxu0 0.0
    %847 = vmatprep.subr.mxu0 0.0
    %848 = vmatpush1.msra.mxu0 0.0
    %849 = vmatprep.subr.mxu0 0.0
    %850 = vmatpush1.msra.mxu0 0.0
    %851 = vmatprep.subr.mxu0 0.0
    %852 = vmatpush1.msra.mxu0 0.0
    %853 = vmatprep.subr.mxu0 0.0
    %854 = vmatpush1.msra.mxu0 0.0
    %855 = vmatprep.subr.mxu0 0.0
    %856 = vmatpush1.msra.mxu0 0.0
    %857 = vmatprep.subr.mxu0 0.0
    %858 = vmatpush1.msra.mxu0 0.0
    %859 = vmatprep.subr.mxu0 0.0
    %860 = vmatpush1.msra.mxu0 0.0
    %861 = vmatprep.subr.mxu0 0.0
    %862 = vmatpush1.msra.mxu0 0.0
    %863 = vmatprep.subr.mxu0 0.0
    %864 = vmatpush1.msra.mxu0 0.0
    %865 = vmatprep.subr.mxu0 0.0
    %866 = vmatpush1.msra.mxu0 0.0
    %867 = vmatprep.subr.mxu0 0.0
    %868 = vmatpush1.msra.mxu0 0.0
    %869 = vmatprep.subr.mxu0 0.0
    %870 = vmatpush1.msra.mxu0 0.0
    %871 = vmatprep.subr.mxu0 0.0
    %872 = vmatpush1.msra.mxu0 0.0
    %873 = vmatprep.subr.mxu0 0.0
    %874 = vmatpush1.msra.mxu0 0.0
    %875 = vmatprep.subr.mxu0 0.0
    %876 = vmatpush1.msra.mxu0 0.0
    %877 = vmatprep.subr.mxu0 0.0
    %878 = vmatpush1.msra.mxu0 0.0
    %879 = vmatprep.subr.mxu0 0.0
    %880 = vmatpush1.msra.mxu0 0.0
    %881 = vmatprep.subr.mxu0 0.0
    %882 = vmatpush1.msra.mxu0 0.0
    %883 = vmatprep.subr.mxu0 0.0
    %884 = vmatpush1.msra.mxu0 0.0
    %885 = vmatprep.mubr.f32.mxu0 0.0
    %886 = vmatmul.mubr.f32.gmra.mrb[0].mxu0 %v819
    %v887 = vpop.f32.mrb[0].mxu0
    %v888 = vadd.f32 0.0, %v887
    %v889 = vpop.f32.mrb[0].mxu0
    %890 = vdwg.mxu0
    %v891 = vadd.f32 %v817, %v888
    %v892 = vtanh.pop %v891
    %893 = vst.msk [vmem:[%s816] sm:$0xff] %vm133, %v892
    %v894 = vld [vmem:[#allocation12] sm:$0xff]
    %v895 = vld [vmem:[#allocation12 + $0x8] sm:$0xff]
    %v896 = vld [vmem:[#allocation12 + $0x10] sm:$0xff]
    %v897 = vld [vmem:[#allocation12 + $0x18] sm:$0xff]
    %v898 = vld [vmem:[#allocation3] sm:$0xff]
    %v899 = vld [vmem:[#allocation3 + $0x8] sm:$0xff]
    %v900 = vld [vmem:[#allocation3 + $0x10] sm:$0xff]
    %v901 = vld [vmem:[#allocation3 + $0x18] sm:$0xff]
    %v902 = vld [vmem:[#allocation3 + $0x20] sm:$0xff]
    %v903 = vld [vmem:[#allocation3 + $0x28] sm:$0xff]
    %v904 = vld [vmem:[#allocation3 + $0x30] sm:$0xff]
    %v905 = vld [vmem:[#allocation3 + $0x38] sm:$0xff]
    %v906 = vld [vmem:[#allocation10] sm:$0xff]
    %v907 = vld [vmem:[#allocation10 + $0x8] sm:$0xff]
    %v908 = vld [vmem:[#allocation10 + $0x10] sm:$0xff]
    %v909 = vld [vmem:[#allocation10 + $0x18] sm:$0xff]
    %v910 = vld [vmem:[%s7] sm:$0x1]
    %v912 = vlaneseq
    %v913 = vshrl.u32 %v912, 7
    %v914 = vsub.s32 0, %v913
    %v915 = vrot.slane %v910, %v914
    %v918 = vsel %vm133, %v898, 0
    %v921 = vsel %vm133, %v899, 0
    %v924 = vsel %vm133, %v900, 0
    %v927 = vsel %vm133, %v901, 0
    %v930 = vsel %vm133, %v902, 0
    %v933 = vsel %vm133, %v903, 0
    %v936 = vsel %vm133, %v904, 0
    %v939 = vsel %vm133, %v905, 0
    %941 = vmatprep.subr.mxu0 0.0
    %942 = vmatpush1.msra.mxu0 %v906
    %943 = vmatprep.subr.mxu0 0.0
    %944 = vmatpush1.msra.mxu0 %v907
    %945 = vmatprep.subr.mxu0 0.0
    %946 = vmatpush1.msra.mxu0 %v908
    %947 = vmatprep.subr.mxu0 0.0
    %948 = vmatpush1.msra.mxu0 %v909
    %949 = vmatprep.subr.mxu0 0.0
    %950 = vmatpush1.msra.mxu0 0.0
    %951 = vmatprep.subr.mxu0 0.0
    %952 = vmatpush1.msra.mxu0 0.0
    %953 = vmatprep.subr.mxu0 0.0
    %954 = vmatpush1.msra.mxu0 0.0
    %955 = vmatprep.subr.mxu0 0.0
    %956 = vmatpush1.msra.mxu0 0.0
    %957 = vmatprep.subr.mxu0 0.0
    %958 = vmatpush1.msra.mxu0 0.0
    %959 = vmatprep.subr.mxu0 0.0
    %960 = vmatpush1.msra.mxu0 0.0
    %961 = vmatprep.subr.mxu0 0.0
    %962 = vmatpush1.msra.mxu0 0.0
    %963 = vmatprep.subr.mxu0 0.0
    %964 = vmatpush1.msra.mxu0 0.0
    %965 = vmatprep.subr.mxu0 0.0
    %966 = vmatpush1.msra.mxu0 0.0
    %967 = vmatprep.subr.mxu0 0.0
    %968 = vmatpush1.msra.mxu0 0.0
    %969 = vmatprep.subr.mxu0 0.0
    %970 = vmatpush1.msra.mxu0 0.0
    %971 = vmatprep.subr.mxu0 0.0
    %972 = vmatpush1.msra.mxu0 0.0
    %973 = vmatprep.subr.mxu0 0.0
    %974 = vmatpush1.msra.mxu0 0.0
    %975 = vmatprep.subr.mxu0 0.0
    %976 = vmatpush1.msra.mxu0 0.0
    %977 = vmatprep.subr.mxu0 0.0
    %978 = vmatpush1.msra.mxu0 0.0
    %979 = vmatprep.subr.mxu0 0.0
    %980 = vmatpush1.msra.mxu0 0.0
    %981 = vmatprep.subr.mxu0 0.0
    %982 = vmatpush1.msra.mxu0 0.0
    %983 = vmatprep.subr.mxu0 0.0
    %984 = vmatpush1.msra.mxu0 0.0
    %985 = vmatprep.subr.mxu0 0.0
    %986 = vmatpush1.msra.mxu0 0.0
    %987 = vmatprep.subr.mxu0 0.0
    %988 = vmatpush1.msra.mxu0 0.0
    %989 = vmatprep.subr.mxu0 0.0
    %990 = vmatpush1.msra.mxu0 0.0
    %991 = vmatprep.subr.mxu0 0.0
    %992 = vmatpush1.msra.mxu0 0.0
    %993 = vmatprep.subr.mxu0 0.0
    %994 = vmatpush1.msra.mxu0 0.0
    %995 = vmatprep.subr.mxu0 0.0
    %996 = vmatpush1.msra.mxu0 0.0
    %997 = vmatprep.subr.mxu0 0.0
    %998 = vmatpush1.msra.mxu0 0.0
    %999 = vmatprep.subr.mxu0 0.0
    %1000 = vmatpush1.msra.mxu0 0.0
    %1001 = vmatprep.subr.mxu0 0.0
    %1002 = vmatpush1.msra.mxu0 0.0
    %1003 = vmatprep.subr.mxu0 0.0
    %1004 = vmatpush1.msra.mxu0 0.0
    %1005 = vmatprep.mubr.f32.mxu0 0.0
    %1006 = vmatmul.mubr.f32.gmra.mrb[0].mxu0 %v918
    %v1007 = vpop.f32.mrb[0].mxu0
    %v1008 = vadd.f32 %v915, %v1007
    %v1009 = vpop.f32.mrb[0].mxu0
    %1010 = vmatprep.mubr.f32.mxu0 0.0
    %1011 = vmatmul.mubr.f32.gmra.mrb[0].mxu0 %v921
    %v1012 = vpop.f32.mrb[0].mxu0
    %v1013 = vadd.f32 %v915, %v1012
    %v1014 = vpop.f32.mrb[0].mxu0
    %1015 = vmatprep.mubr.f32.mxu0 0.0
    %1016 = vmatmul.mubr.f32.gmra.mrb[0].mxu0 %v924
    %v1017 = vpop.f32.mrb[0].mxu0
    %v1018 = vadd.f32 %v915, %v1017
    %v1019 = vpop.f32.mrb[0].mxu0
    %1020 = vmatprep.mubr.f32.mxu0 0.0
    %1021 = vmatmul.mubr.f32.gmra.mrb[0].mxu0 %v927
    %v1022 = vpop.f32.mrb[0].mxu0
    %v1023 = vadd.f32 %v915, %v1022
    %v1024 = vpop.f32.mrb[0].mxu0
    %1025 = vmatprep.mubr.f32.mxu0 0.0
    %1026 = vmatmul.mubr.f32.gmra.mrb[0].mxu0 %v930
    %v1027 = vpop.f32.mrb[0].mxu0
    %v1028 = vadd.f32 %v915, %v1027
    %v1029 = vpop.f32.mrb[0].mxu0
    %1030 = vmatprep.mubr.f32.mxu0 0.0
    %1031 = vmatmul.mubr.f32.gmra.mrb[0].mxu0 %v933
    %v1032 = vpop.f32.mrb[0].mxu0
    %v1033 = vadd.f32 %v915, %v1032
    %v1034 = vpop.f32.mrb[0].mxu0
    %1035 = vmatprep.mubr.f32.mxu0 0.0
    %1036 = vmatmul.mubr.f32.gmra.mrb[0].mxu0 %v936
    %v1037 = vpop.f32.mrb[0].mxu0
    %v1038 = vadd.f32 %v915, %v1037
    %v1039 = vpop.f32.mrb[0].mxu0
    %1040 = vmatprep.mubr.f32.mxu0 0.0
    %1041 = vmatmul.mubr.f32.gmra.mrb[0].mxu0 %v939
    %v1042 = vpop.f32.mrb[0].mxu0
    %v1043 = vadd.f32 %v915, %v1042
    %v1044 = vpop.f32.mrb[0].mxu0
    %1045 = vdwg.mxu0
    %1046 = vst.msk [vmem:[#allocation4] sm:$0xff] %vm133, %v1008
    %1047 = vst.msk [vmem:[#allocation4 + $0x8] sm:$0xff] %vm133, %v1013
    %1048 = vst.msk [vmem:[#allocation4 + $0x10] sm:$0xff] %vm133, %v1018
    %1049 = vst.msk [vmem:[#allocation4 + $0x18] sm:$0xff] %vm133, %v1023
    %1050 = vst.msk [vmem:[#allocation4 + $0x20] sm:$0xff] %vm133, %v1028
    %1051 = vst.msk [vmem:[#allocation4 + $0x28] sm:$0xff] %vm133, %v1033
    %1052 = vst.msk [vmem:[#allocation4 + $0x30] sm:$0xff] %vm133, %v1038
    %1053 = vst.msk [vmem:[#allocation4 + $0x38] sm:$0xff] %vm133, %v1043
    %v1054 = vld [vmem:[#allocation4] sm:$0xff]
    %1055 = vmatprep.subr.mxu0 0.0
    %1056 = vmatpush1.msra.mxu0 %v894
    %1057 = vmatprep.subr.mxu0 0.0
    %1058 = vmatpush1.msra.mxu0 %v895
    %1059 = vmatprep.subr.mxu0 0.0
    %1060 = vmatpush1.msra.mxu0 %v896
    %1061 = vmatprep.subr.mxu0 0.0
    %1062 = vmatpush1.msra.mxu0 %v897
    %1063 = vmatprep.subr.mxu0 0.0
    %1064 = vmatpush1.msra.mxu0 0.0
    %1065 = vmatprep.subr.mxu0 0.0
    %1066 = vmatpush1.msra.mxu0 0.0
    %1067 = vmatprep.subr.mxu0 0.0
    %1068 = vmatpush1.msra.mxu0 0.0
    %1069 = vmatprep.subr.mxu0 0.0
    %1070 = vmatpush1.msra.mxu0 0.0
    %1071 = vmatprep.subr.mxu0 0.0
    %1072 = vmatpush1.msra.mxu0 0.0
    %1073 = vmatprep.subr.mxu0 0.0
    %1074 = vmatpush1.msra.mxu0 0.0
    %1075 = vmatprep.subr.mxu0 0.0
    %1076 = vmatpush1.msra.mxu0 0.0
    %1077 = vmatprep.subr.mxu0 0.0
    %1078 = vmatpush1.msra.mxu0 0.0
    %1079 = vmatprep.subr.mxu0 0.0
    %1080 = vmatpush1.msra.mxu0 0.0
    %1081 = vmatprep.subr.mxu0 0.0
    %1082 = vmatpush1.msra.mxu0 0.0
    %1083 = vmatprep.subr.mxu0 0.0
    %1084 = vmatpush1.msra.mxu0 0.0
    %1085 = vmatprep.subr.mxu0 0.0
    %1086 = vmatpush1.msra.mxu0 0.0
    %1087 = vmatprep.subr.mxu0 0.0
    %1088 = vmatpush1.msra.mxu0 0.0
    %1089 = vmatprep.subr.mxu0 0.0
    %1090 = vmatpush1.msra.mxu0 0.0
    %1091 = vmatprep.subr.mxu0 0.0
    %1092 = vmatpush1.msra.mxu0 0.0
    %1093 = vmatprep.subr.mxu0 0.0
    %1094 = vmatpush1.msra.mxu0 0.0
    %1095 = vmatprep.subr.mxu0 0.0
    %1096 = vmatpush1.msra.mxu0 0.0
    %1097 = vmatprep.subr.mxu0 0.0
    %1098 = vmatpush1.msra.mxu0 0.0
    %1099 = vmatprep.subr.mxu0 0.0
    %1100 = vmatpush1.msra.mxu0 0.0
    %1101 = vmatprep.subr.mxu0 0.0
    %1102 = vmatpush1.msra.mxu0 0.0
    %1103 = vmatprep.subr.mxu0 0.0
    %1104 = vmatpush1.msra.mxu0 0.0
    %1105 = vmatprep.subr.mxu0 0.0
    %1106 = vmatpush1.msra.mxu0 0.0
    %1107 = vmatprep.subr.mxu0 0.0
    %1108 = vmatpush1.msra.mxu0 0.0
    %1109 = vmatprep.subr.mxu0 0.0
    %1110 = vmatpush1.msra.mxu0 0.0
    %1111 = vmatprep.subr.mxu0 0.0
    %1112 = vmatpush1.msra.mxu0 0.0
    %1113 = vmatprep.subr.mxu0 0.0
    %1114 = vmatpush1.msra.mxu0 0.0
    %1115 = vmatprep.subr.mxu0 0.0
    %1116 = vmatpush1.msra.mxu0 0.0
    %1117 = vmatprep.subr.mxu0 0.0
    %1118 = vmatpush1.msra.mxu0 0.0
    %1119 = vmatprep.mubr.f32.mxu0 0.0
    %1120 = vmatmul.mubr.f32.gmra.mrb[0].mxu0 %v273
    %v1121 = vpop.f32.mrb[0].mxu0
    %v1122 = vadd.f32 0.0, %v1121
    %v1123 = vpop.f32.mrb[0].mxu0
    %1124 = vdwg.mxu0
    %v1125 = vadd.f32 %v1054, %v1122
    %v1126 = vtanh.pop %v1125
    %1127 = vst.msk [vmem:[#allocation4] sm:$0xff] %vm133, %v1126
    %s1128 = scalar_lea.vmem [#allocation4], 8
    %v1129 = vld [vmem:[%s1128] sm:$0xff]
    %v1131 = vsel %vm133, %v1126, 0
    %1133 = vmatprep.subr.mxu0 0.0
    %1134 = vmatpush1.msra.mxu0 %v894
    %1135 = vmatprep.subr.mxu0 0.0
    %1136 = vmatpush1.msra.mxu0 %v895
    %1137 = vmatprep.subr.mxu0 0.0
    %1138 = vmatpush1.msra.mxu0 %v896
    %1139 = vmatprep.subr.mxu0 0.0
    %1140 = vmatpush1.msra.mxu0 %v897
    %1141 = vmatprep.subr.mxu0 0.0
    %1142 = vmatpush1.msra.mxu0 0.0
    %1143 = vmatprep.subr.mxu0 0.0
    %1144 = vmatpush1.msra.mxu0 0.0
    %1145 = vmatprep.subr.mxu0 0.0
    %1146 = vmatpush1.msra.mxu0 0.0
    %1147 = vmatprep.subr.mxu0 0.0
    %1148 = vmatpush1.msra.mxu0 0.0
    %1149 = vmatprep.subr.mxu0 0.0
    %1150 = vmatpush1.msra.mxu0 0.0
    %1151 = vmatprep.subr.mxu0 0.0
    %1152 = vmatpush1.msra.mxu0 0.0
    %1153 = vmatprep.subr.mxu0 0.0
    %1154 = vmatpush1.msra.mxu0 0.0
    %1155 = vmatprep.subr.mxu0 0.0
    %1156 = vmatpush1.msra.mxu0 0.0
    %1157 = vmatprep.subr.mxu0 0.0
    %1158 = vmatpush1.msra.mxu0 0.0
    %1159 = vmatprep.subr.mxu0 0.0
    %1160 = vmatpush1.msra.mxu0 0.0
    %1161 = vmatprep.subr.mxu0 0.0
    %1162 = vmatpush1.msra.mxu0 0.0
    %1163 = vmatprep.subr.mxu0 0.0
    %1164 = vmatpush1.msra.mxu0 0.0
    %1165 = vmatprep.subr.mxu0 0.0
    %1166 = vmatpush1.msra.mxu0 0.0
    %1167 = vmatprep.subr.mxu0 0.0
    %1168 = vmatpush1.msra.mxu0 0.0
    %1169 = vmatprep.subr.mxu0 0.0
    %1170 = vmatpush1.msra.mxu0 0.0
    %1171 = vmatprep.subr.mxu0 0.0
    %1172 = vmatpush1.msra.mxu0 0.0
    %1173 = vmatprep.subr.mxu0 0.0
    %1174 = vmatpush1.msra.mxu0 0.0
    %1175 = vmatprep.subr.mxu0 0.0
    %1176 = vmatpush1.msra.mxu0 0.0
    %1177 = vmatprep.subr.mxu0 0.0
    %1178 = vmatpush1.msra.mxu0 0.0
    %1179 = vmatprep.subr.mxu0 0.0
    %1180 = vmatpush1.msra.mxu0 0.0
    %1181 = vmatprep.subr.mxu0 0.0
    %1182 = vmatpush1.msra.mxu0 0.0
    %1183 = vmatprep.subr.mxu0 0.0
    %1184 = vmatpush1.msra.mxu0 0.0
    %1185 = vmatprep.subr.mxu0 0.0
    %1186 = vmatpush1.msra.mxu0 0.0
    %1187 = vmatprep.subr.mxu0 0.0
    %1188 = vmatpush1.msra.mxu0 0.0
    %1189 = vmatprep.subr.mxu0 0.0
    %1190 = vmatpush1.msra.mxu0 0.0
    %1191 = vmatprep.subr.mxu0 0.0
    %1192 = vmatpush1.msra.mxu0 0.0
    %1193 = vmatprep.subr.mxu0 0.0
    %1194 = vmatpush1.msra.mxu0 0.0
    %1195 = vmatprep.subr.mxu0 0.0
    %1196 = vmatpush1.msra.mxu0 0.0
    %1197 = vmatprep.mubr.f32.mxu0 0.0
    %1198 = vmatmul.mubr.f32.gmra.mrb[0].mxu0 %v1131
    %v1199 = vpop.f32.mrb[0].mxu0
    %v1200 = vadd.f32 0.0, %v1199
    %v1201 = vpop.f32.mrb[0].mxu0
    %1202 = vdwg.mxu0
    %v1203 = vadd.f32 %v1129, %v1200
    %v1204 = vtanh.pop %v1203
    %1205 = vst.msk [vmem:[%s1128] sm:$0xff] %vm133, %v1204
    %s1206 = scalar_lea.vmem [#allocation4], 16
    %v1207 = vld [vmem:[%s1206] sm:$0xff]
    %v1209 = vsel %vm133, %v1204, 0
    %1211 = vmatprep.subr.mxu0 0.0
    %1212 = vmatpush1.msra.mxu0 %v894
    %1213 = vmatprep.subr.mxu0 0.0
    %1214 = vmatpush1.msra.mxu0 %v895
    %1215 = vmatprep.subr.mxu0 0.0
    %1216 = vmatpush1.msra.mxu0 %v896
    %1217 = vmatprep.subr.mxu0 0.0
    %1218 = vmatpush1.msra.mxu0 %v897
    %1219 = vmatprep.subr.mxu0 0.0
    %1220 = vmatpush1.msra.mxu0 0.0
    %1221 = vmatprep.subr.mxu0 0.0
    %1222 = vmatpush1.msra.mxu0 0.0
    %1223 = vmatprep.subr.mxu0 0.0
    %1224 = vmatpush1.msra.mxu0 0.0
    %1225 = vmatprep.subr.mxu0 0.0
    %1226 = vmatpush1.msra.mxu0 0.0
    %1227 = vmatprep.subr.mxu0 0.0
    %1228 = vmatpush1.msra.mxu0 0.0
    %1229 = vmatprep.subr.mxu0 0.0
    %1230 = vmatpush1.msra.mxu0 0.0
    %1231 = vmatprep.subr.mxu0 0.0
    %1232 = vmatpush1.msra.mxu0 0.0
    %1233 = vmatprep.subr.mxu0 0.0
    %1234 = vmatpush1.msra.mxu0 0.0
    %1235 = vmatprep.subr.mxu0 0.0
    %1236 = vmatpush1.msra.mxu0 0.0
    %1237 = vmatprep.subr.mxu0 0.0
    %1238 = vmatpush1.msra.mxu0 0.0
    %1239 = vmatprep.subr.mxu0 0.0
    %1240 = vmatpush1.msra.mxu0 0.0
    %1241 = vmatprep.subr.mxu0 0.0
    %1242 = vmatpush1.msra.mxu0 0.0
    %1243 = vmatprep.subr.mxu0 0.0
    %1244 = vmatpush1.msra.mxu0 0.0
    %1245 = vmatprep.subr.mxu0 0.0
    %1246 = vmatpush1.msra.mxu0 0.0
    %1247 = vmatprep.subr.mxu0 0.0
    %1248 = vmatpush1.msra.mxu0 0.0
    %1249 = vmatprep.subr.mxu0 0.0
    %1250 = vmatpush1.msra.mxu0 0.0
    %1251 = vmatprep.subr.mxu0 0.0
    %1252 = vmatpush1.msra.mxu0 0.0
    %1253 = vmatprep.subr.mxu0 0.0
    %1254 = vmatpush1.msra.mxu0 0.0
    %1255 = vmatprep.subr.mxu0 0.0
    %1256 = vmatpush1.msra.mxu0 0.0
    %1257 = vmatprep.subr.mxu0 0.0
    %1258 = vmatpush1.msra.mxu0 0.0
    %1259 = vmatprep.subr.mxu0 0.0
    %1260 = vmatpush1.msra.mxu0 0.0
    %1261 = vmatprep.subr.mxu0 0.0
    %1262 = vmatpush1.msra.mxu0 0.0
    %1263 = vmatprep.subr.mxu0 0.0
    %1264 = vmatpush1.msra.mxu0 0.0
    %1265 = vmatprep.subr.mxu0 0.0
    %1266 = vmatpush1.msra.mxu0 0.0
    %1267 = vmatprep.subr.mxu0 0.0
    %1268 = vmatpush1.msra.mxu0 0.0
    %1269 = vmatprep.subr.mxu0 0.0
    %1270 = vmatpush1.msra.mxu0 0.0
    %1271 = vmatprep.subr.mxu0 0.0
    %1272 = vmatpush1.msra.mxu0 0.0
    %1273 = vmatprep.subr.mxu0 0.0
    %1274 = vmatpush1.msra.mxu0 0.0
    %1275 = vmatprep.mubr.f32.mxu0 0.0
    %1276 = vmatmul.mubr.f32.gmra.mrb[0].mxu0 %v1209
    %v1277 = vpop.f32.mrb[0].mxu0
    %v1278 = vadd.f32 0.0, %v1277
    %v1279 = vpop.f32.mrb[0].mxu0
    %1280 = vdwg.mxu0
    %v1281 = vadd.f32 %v1207, %v1278
    %v1282 = vtanh.pop %v1281
    %1283 = vst.msk [vmem:[%s1206] sm:$0xff] %vm133, %v1282
    %s1284 = scalar_lea.vmem [#allocation4], 24
    %v1285 = vld [vmem:[%s1284] sm:$0xff]
    %v1287 = vsel %vm133, %v1282, 0
    %1289 = vmatprep.subr.mxu0 0.0
    %1290 = vmatpush1.msra.mxu0 %v894
    %1291 = vmatprep.subr.mxu0 0.0
    %1292 = vmatpush1.msra.mxu0 %v895
    %1293 = vmatprep.subr.mxu0 0.0
    %1294 = vmatpush1.msra.mxu0 %v896
    %1295 = vmatprep.subr.mxu0 0.0
    %1296 = vmatpush1.msra.mxu0 %v897
    %1297 = vmatprep.subr.mxu0 0.0
    %1298 = vmatpush1.msra.mxu0 0.0
    %1299 = vmatprep.subr.mxu0 0.0
    %1300 = vmatpush1.msra.mxu0 0.0
    %1301 = vmatprep.subr.mxu0 0.0
    %1302 = vmatpush1.msra.mxu0 0.0
    %1303 = vmatprep.subr.mxu0 0.0
    %1304 = vmatpush1.msra.mxu0 0.0
    %1305 = vmatprep.subr.mxu0 0.0
    %1306 = vmatpush1.msra.mxu0 0.0
    %1307 = vmatprep.subr.mxu0 0.0
    %1308 = vmatpush1.msra.mxu0 0.0
    %1309 = vmatprep.subr.mxu0 0.0
    %1310 = vmatpush1.msra.mxu0 0.0
    %1311 = vmatprep.subr.mxu0 0.0
    %1312 = vmatpush1.msra.mxu0 0.0
    %1313 = vmatprep.subr.mxu0 0.0
    %1314 = vmatpush1.msra.mxu0 0.0
    %1315 = vmatprep.subr.mxu0 0.0
    %1316 = vmatpush1.msra.mxu0 0.0
    %1317 = vmatprep.subr.mxu0 0.0
    %1318 = vmatpush1.msra.mxu0 0.0
    %1319 = vmatprep.subr.mxu0 0.0
    %1320 = vmatpush1.msra.mxu0 0.0
    %1321 = vmatprep.subr.mxu0 0.0
    %1322 = vmatpush1.msra.mxu0 0.0
    %1323 = vmatprep.subr.mxu0 0.0
    %1324 = vmatpush1.msra.mxu0 0.0
    %1325 = vmatprep.subr.mxu0 0.0
    %1326 = vmatpush1.msra.mxu0 0.0
    %1327 = vmatprep.subr.mxu0 0.0
    %1328 = vmatpush1.msra.mxu0 0.0
    %1329 = vmatprep.subr.mxu0 0.0
    %1330 = vmatpush1.msra.mxu0 0.0
    %1331 = vmatprep.subr.mxu0 0.0
    %1332 = vmatpush1.msra.mxu0 0.0
    %1333 = vmatprep.subr.mxu0 0.0
    %1334 = vmatpush1.msra.mxu0 0.0
    %1335 = vmatprep.subr.mxu0 0.0
    %1336 = vmatpush1.msra.mxu0 0.0
    %1337 = vmatprep.subr.mxu0 0.0
    %1338 = vmatpush1.msra.mxu0 0.0
    %1339 = vmatprep.subr.mxu0 0.0
    %1340 = vmatpush1.msra.mxu0 0.0
    %1341 = vmatprep.subr.mxu0 0.0
    %1342 = vmatpush1.msra.mxu0 0.0
    %1343 = vmatprep.subr.mxu0 0.0
    %1344 = vmatpush1.msra.mxu0 0.0
    %1345 = vmatprep.subr.mxu0 0.0
    %1346 = vmatpush1.msra.mxu0 0.0
    %1347 = vmatprep.subr.mxu0 0.0
    %1348 = vmatpush1.msra.mxu0 0.0
    %1349 = vmatprep.subr.mxu0 0.0
    %1350 = vmatpush1.msra.mxu0 0.0
    %1351 = vmatprep.subr.mxu0 0.0
    %1352 = vmatpush1.msra.mxu0 0.0
    %1353 = vmatprep.mubr.f32.mxu0 0.0
    %1354 = vmatmul.mubr.f32.gmra.mrb[0].mxu0 %v1287
    %v1355 = vpop.f32.mrb[0].mxu0
    %v1356 = vadd.f32 0.0, %v1355
    %v1357 = vpop.f32.mrb[0].mxu0
    %1358 = vdwg.mxu0
    %v1359 = vadd.f32 %v1285, %v1356
    %v1360 = vtanh.pop %v1359
    %1361 = vst.msk [vmem:[%s1284] sm:$0xff] %vm133, %v1360
    %s1362 = scalar_lea.vmem [#allocation4], 32
    %v1363 = vld [vmem:[%s1362] sm:$0xff]
    %v1365 = vsel %vm133, %v1360, 0
    %1367 = vmatprep.subr.mxu0 0.0
    %1368 = vmatpush1.msra.mxu0 %v894
    %1369 = vmatprep.subr.mxu0 0.0
    %1370 = vmatpush1.msra.mxu0 %v895
    %1371 = vmatprep.subr.mxu0 0.0
    %1372 = vmatpush1.msra.mxu0 %v896
    %1373 = vmatprep.subr.mxu0 0.0
    %1374 = vmatpush1.msra.mxu0 %v897
    %1375 = vmatprep.subr.mxu0 0.0
    %1376 = vmatpush1.msra.mxu0 0.0
    %1377 = vmatprep.subr.mxu0 0.0
    %1378 = vmatpush1.msra.mxu0 0.0
    %1379 = vmatprep.subr.mxu0 0.0
    %1380 = vmatpush1.msra.mxu0 0.0
    %1381 = vmatprep.subr.mxu0 0.0
    %1382 = vmatpush1.msra.mxu0 0.0
    %1383 = vmatprep.subr.mxu0 0.0
    %1384 = vmatpush1.msra.mxu0 0.0
    %1385 = vmatprep.subr.mxu0 0.0
    %1386 = vmatpush1.msra.mxu0 0.0
    %1387 = vmatprep.subr.mxu0 0.0
    %1388 = vmatpush1.msra.mxu0 0.0
    %1389 = vmatprep.subr.mxu0 0.0
    %1390 = vmatpush1.msra.mxu0 0.0
    %1391 = vmatprep.subr.mxu0 0.0
    %1392 = vmatpush1.msra.mxu0 0.0
    %1393 = vmatprep.subr.mxu0 0.0
    %1394 = vmatpush1.msra.mxu0 0.0
    %1395 = vmatprep.subr.mxu0 0.0
    %1396 = vmatpush1.msra.mxu0 0.0
    %1397 = vmatprep.subr.mxu0 0.0
    %1398 = vmatpush1.msra.mxu0 0.0
    %1399 = vmatprep.subr.mxu0 0.0
    %1400 = vmatpush1.msra.mxu0 0.0
    %1401 = vmatprep.subr.mxu0 0.0
    %1402 = vmatpush1.msra.mxu0 0.0
    %1403 = vmatprep.subr.mxu0 0.0
    %1404 = vmatpush1.msra.mxu0 0.0
    %1405 = vmatprep.subr.mxu0 0.0
    %1406 = vmatpush1.msra.mxu0 0.0
    %1407 = vmatprep.subr.mxu0 0.0
    %1408 = vmatpush1.msra.mxu0 0.0
    %1409 = vmatprep.subr.mxu0 0.0
    %1410 = vmatpush1.msra.mxu0 0.0
    %1411 = vmatprep.subr.mxu0 0.0
    %1412 = vmatpush1.msra.mxu0 0.0
    %1413 = vmatprep.subr.mxu0 0.0
    %1414 = vmatpush1.msra.mxu0 0.0
    %1415 = vmatprep.subr.mxu0 0.0
    %1416 = vmatpush1.msra.mxu0 0.0
    %1417 = vmatprep.subr.mxu0 0.0
    %1418 = vmatpush1.msra.mxu0 0.0
    %1419 = vmatprep.subr.mxu0 0.0
    %1420 = vmatpush1.msra.mxu0 0.0
    %1421 = vmatprep.subr.mxu0 0.0
    %1422 = vmatpush1.msra.mxu0 0.0
    %1423 = vmatprep.subr.mxu0 0.0
    %1424 = vmatpush1.msra.mxu0 0.0
    %1425 = vmatprep.subr.mxu0 0.0
    %1426 = vmatpush1.msra.mxu0 0.0
    %1427 = vmatprep.subr.mxu0 0.0
    %1428 = vmatpush1.msra.mxu0 0.0
    %1429 = vmatprep.subr.mxu0 0.0
    %1430 = vmatpush1.msra.mxu0 0.0
    %1431 = vmatprep.mubr.f32.mxu0 0.0
    %1432 = vmatmul.mubr.f32.gmra.mrb[0].mxu0 %v1365
    %v1433 = vpop.f32.mrb[0].mxu0
    %v1434 = vadd.f32 0.0, %v1433
    %v1435 = vpop.f32.mrb[0].mxu0
    %1436 = vdwg.mxu0
    %v1437 = vadd.f32 %v1363, %v1434
    %v1438 = vtanh.pop %v1437
    %1439 = vst.msk [vmem:[%s1362] sm:$0xff] %vm133, %v1438
    %s1440 = scalar_lea.vmem [#allocation4], 40
    %v1441 = vld [vmem:[%s1440] sm:$0xff]
    %v1443 = vsel %vm133, %v1438, 0
    %1445 = vmatprep.subr.mxu0 0.0
    %1446 = vmatpush1.msra.mxu0 %v894
    %1447 = vmatprep.subr.mxu0 0.0
    %1448 = vmatpush1.msra.mxu0 %v895
    %1449 = vmatprep.subr.mxu0 0.0
    %1450 = vmatpush1.msra.mxu0 %v896
    %1451 = vmatprep.subr.mxu0 0.0
    %1452 = vmatpush1.msra.mxu0 %v897
    %1453 = vmatprep.subr.mxu0 0.0
    %1454 = vmatpush1.msra.mxu0 0.0
    %1455 = vmatprep.subr.mxu0 0.0
    %1456 = vmatpush1.msra.mxu0 0.0
    %1457 = vmatprep.subr.mxu0 0.0
    %1458 = vmatpush1.msra.mxu0 0.0
    %1459 = vmatprep.subr.mxu0 0.0
    %1460 = vmatpush1.msra.mxu0 0.0
    %1461 = vmatprep.subr.mxu0 0.0
    %1462 = vmatpush1.msra.mxu0 0.0
    %1463 = vmatprep.subr.mxu0 0.0
    %1464 = vmatpush1.msra.mxu0 0.0
    %1465 = vmatprep.subr.mxu0 0.0
    %1466 = vmatpush1.msra.mxu0 0.0
    %1467 = vmatprep.subr.mxu0 0.0
    %1468 = vmatpush1.msra.mxu0 0.0
    %1469 = vmatprep.subr.mxu0 0.0
    %1470 = vmatpush1.msra.mxu0 0.0
    %1471 = vmatprep.subr.mxu0 0.0
    %1472 = vmatpush1.msra.mxu0 0.0
    %1473 = vmatprep.subr.mxu0 0.0
    %1474 = vmatpush1.msra.mxu0 0.0
    %1475 = vmatprep.subr.mxu0 0.0
    %1476 = vmatpush1.msra.mxu0 0.0
    %1477 = vmatprep.subr.mxu0 0.0
    %1478 = vmatpush1.msra.mxu0 0.0
    %1479 = vmatprep.subr.mxu0 0.0
    %1480 = vmatpush1.msra.mxu0 0.0
    %1481 = vmatprep.subr.mxu0 0.0
    %1482 = vmatpush1.msra.mxu0 0.0
    %1483 = vmatprep.subr.mxu0 0.0
    %1484 = vmatpush1.msra.mxu0 0.0
    %1485 = vmatprep.subr.mxu0 0.0
    %1486 = vmatpush1.msra.mxu0 0.0
    %1487 = vmatprep.subr.mxu0 0.0
    %1488 = vmatpush1.msra.mxu0 0.0
    %1489 = vmatprep.subr.mxu0 0.0
    %1490 = vmatpush1.msra.mxu0 0.0
    %1491 = vmatprep.subr.mxu0 0.0
    %1492 = vmatpush1.msra.mxu0 0.0
    %1493 = vmatprep.subr.mxu0 0.0
    %1494 = vmatpush1.msra.mxu0 0.0
    %1495 = vmatprep.subr.mxu0 0.0
    %1496 = vmatpush1.msra.mxu0 0.0
    %1497 = vmatprep.subr.mxu0 0.0
    %1498 = vmatpush1.msra.mxu0 0.0
    %1499 = vmatprep.subr.mxu0 0.0
    %1500 = vmatpush1.msra.mxu0 0.0
    %1501 = vmatprep.subr.mxu0 0.0
    %1502 = vmatpush1.msra.mxu0 0.0
    %1503 = vmatprep.subr.mxu0 0.0
    %1504 = vmatpush1.msra.mxu0 0.0
    %1505 = vmatprep.subr.mxu0 0.0
    %1506 = vmatpush1.msra.mxu0 0.0
    %1507 = vmatprep.subr.mxu0 0.0
    %1508 = vmatpush1.msra.mxu0 0.0
    %1509 = vmatprep.mubr.f32.mxu0 0.0
    %1510 = vmatmul.mubr.f32.gmra.mrb[0].mxu0 %v1443
    %v1511 = vpop.f32.mrb[0].mxu0
    %v1512 = vadd.f32 0.0, %v1511
    %v1513 = vpop.f32.mrb[0].mxu0
    %1514 = vdwg.mxu0
    %v1515 = vadd.f32 %v1441, %v1512
    %v1516 = vtanh.pop %v1515
    %1517 = vst.msk [vmem:[%s1440] sm:$0xff] %vm133, %v1516
    %s1518 = scalar_lea.vmem [#allocation4], 48
    %v1519 = vld [vmem:[%s1518] sm:$0xff]
    %v1521 = vsel %vm133, %v1516, 0
    %1523 = vmatprep.subr.mxu0 0.0
    %1524 = vmatpush1.msra.mxu0 %v894
    %1525 = vmatprep.subr.mxu0 0.0
    %1526 = vmatpush1.msra.mxu0 %v895
    %1527 = vmatprep.subr.mxu0 0.0
    %1528 = vmatpush1.msra.mxu0 %v896
    %1529 = vmatprep.subr.mxu0 0.0
    %1530 = vmatpush1.msra.mxu0 %v897
    %1531 = vmatprep.subr.mxu0 0.0
    %1532 = vmatpush1.msra.mxu0 0.0
    %1533 = vmatprep.subr.mxu0 0.0
    %1534 = vmatpush1.msra.mxu0 0.0
    %1535 = vmatprep.subr.mxu0 0.0
    %1536 = vmatpush1.msra.mxu0 0.0
    %1537 = vmatprep.subr.mxu0 0.0
    %1538 = vmatpush1.msra.mxu0 0.0
    %1539 = vmatprep.subr.mxu0 0.0
    %1540 = vmatpush1.msra.mxu0 0.0
    %1541 = vmatprep.subr.mxu0 0.0
    %1542 = vmatpush1.msra.mxu0 0.0
    %1543 = vmatprep.subr.mxu0 0.0
    %1544 = vmatpush1.msra.mxu0 0.0
    %1545 = vmatprep.subr.mxu0 0.0
    %1546 = vmatpush1.msra.mxu0 0.0
    %1547 = vmatprep.subr.mxu0 0.0
    %1548 = vmatpush1.msra.mxu0 0.0
    %1549 = vmatprep.subr.mxu0 0.0
    %1550 = vmatpush1.msra.mxu0 0.0
    %1551 = vmatprep.subr.mxu0 0.0
    %1552 = vmatpush1.msra.mxu0 0.0
    %1553 = vmatprep.subr.mxu0 0.0
    %1554 = vmatpush1.msra.mxu0 0.0
    %1555 = vmatprep.subr.mxu0 0.0
    %1556 = vmatpush1.msra.mxu0 0.0
    %1557 = vmatprep.subr.mxu0 0.0
    %1558 = vmatpush1.msra.mxu0 0.0
    %1559 = vmatprep.subr.mxu0 0.0
    %1560 = vmatpush1.msra.mxu0 0.0
    %1561 = vmatprep.subr.mxu0 0.0
    %1562 = vmatpush1.msra.mxu0 0.0
    %1563 = vmatprep.subr.mxu0 0.0
    %1564 = vmatpush1.msra.mxu0 0.0
    %1565 = vmatprep.subr.mxu0 0.0
    %1566 = vmatpush1.msra.mxu0 0.0
    %1567 = vmatprep.subr.mxu0 0.0
    %1568 = vmatpush1.msra.mxu0 0.0
    %1569 = vmatprep.subr.mxu0 0.0
    %1570 = vmatpush1.msra.mxu0 0.0
    %1571 = vmatprep.subr.mxu0 0.0
    %1572 = vmatpush1.msra.mxu0 0.0
    %1573 = vmatprep.subr.mxu0 0.0
    %1574 = vmatpush1.msra.mxu0 0.0
    %1575 = vmatprep.subr.mxu0 0.0
    %1576 = vmatpush1.msra.mxu0 0.0
    %1577 = vmatprep.subr.mxu0 0.0
    %1578 = vmatpush1.msra.mxu0 0.0
    %1579 = vmatprep.subr.mxu0 0.0
    %1580 = vmatpush1.msra.mxu0 0.0
    %1581 = vmatprep.subr.mxu0 0.0
    %1582 = vmatpush1.msra.mxu0 0.0
    %1583 = vmatprep.subr.mxu0 0.0
    %1584 = vmatpush1.msra.mxu0 0.0
    %1585 = vmatprep.subr.mxu0 0.0
    %1586 = vmatpush1.msra.mxu0 0.0
    %1587 = vmatprep.mubr.f32.mxu0 0.0
    %1588 = vmatmul.mubr.f32.gmra.mrb[0].mxu0 %v1521
    %v1589 = vpop.f32.mrb[0].mxu0
    %v1590 = vadd.f32 0.0, %v1589
    %v1591 = vpop.f32.mrb[0].mxu0
    %1592 = vdwg.mxu0
    %v1593 = vadd.f32 %v1519, %v1590
    %v1594 = vtanh.pop %v1593
    %1595 = vst.msk [vmem:[%s1518] sm:$0xff] %vm133, %v1594
    %s1596 = scalar_lea.vmem [#allocation4], 56
    %v1597 = vld [vmem:[%s1596] sm:$0xff]
    %v1599 = vsel %vm133, %v1594, 0
    %1601 = vmatprep.subr.mxu0 0.0
    %1602 = vmatpush1.msra.mxu0 %v894
    %1603 = vmatprep.subr.mxu0 0.0
    %1604 = vmatpush1.msra.mxu0 %v895
    %1605 = vmatprep.subr.mxu0 0.0
    %1606 = vmatpush1.msra.mxu0 %v896
    %1607 = vmatprep.subr.mxu0 0.0
    %1608 = vmatpush1.msra.mxu0 %v897
    %1609 = vmatprep.subr.mxu0 0.0
    %1610 = vmatpush1.msra.mxu0 0.0
    %1611 = vmatprep.subr.mxu0 0.0
    %1612 = vmatpush1.msra.mxu0 0.0
    %1613 = vmatprep.subr.mxu0 0.0
    %1614 = vmatpush1.msra.mxu0 0.0
    %1615 = vmatprep.subr.mxu0 0.0
    %1616 = vmatpush1.msra.mxu0 0.0
    %1617 = vmatprep.subr.mxu0 0.0
    %1618 = vmatpush1.msra.mxu0 0.0
    %1619 = vmatprep.subr.mxu0 0.0
    %1620 = vmatpush1.msra.mxu0 0.0
    %1621 = vmatprep.subr.mxu0 0.0
    %1622 = vmatpush1.msra.mxu0 0.0
    %1623 = vmatprep.subr.mxu0 0.0
    %1624 = vmatpush1.msra.mxu0 0.0
    %1625 = vmatprep.subr.mxu0 0.0
    %1626 = vmatpush1.msra.mxu0 0.0
    %1627 = vmatprep.subr.mxu0 0.0
    %1628 = vmatpush1.msra.mxu0 0.0
    %1629 = vmatprep.subr.mxu0 0.0
    %1630 = vmatpush1.msra.mxu0 0.0
    %1631 = vmatprep.subr.mxu0 0.0
    %1632 = vmatpush1.msra.mxu0 0.0
    %1633 = vmatprep.subr.mxu0 0.0
    %1634 = vmatpush1.msra.mxu0 0.0
    %1635 = vmatprep.subr.mxu0 0.0
    %1636 = vmatpush1.msra.mxu0 0.0
    %1637 = vmatprep.subr.mxu0 0.0
    %1638 = vmatpush1.msra.mxu0 0.0
    %1639 = vmatprep.subr.mxu0 0.0
    %1640 = vmatpush1.msra.mxu0 0.0
    %1641 = vmatprep.subr.mxu0 0.0
    %1642 = vmatpush1.msra.mxu0 0.0
    %1643 = vmatprep.subr.mxu0 0.0
    %1644 = vmatpush1.msra.mxu0 0.0
    %1645 = vmatprep.subr.mxu0 0.0
    %1646 = vmatpush1.msra.mxu0 0.0
    %1647 = vmatprep.subr.mxu0 0.0
    %1648 = vmatpush1.msra.mxu0 0.0
    %1649 = vmatprep.subr.mxu0 0.0
    %1650 = vmatpush1.msra.mxu0 0.0
    %1651 = vmatprep.subr.mxu0 0.0
    %1652 = vmatpush1.msra.mxu0 0.0
    %1653 = vmatprep.subr.mxu0 0.0
    %1654 = vmatpush1.msra.mxu0 0.0
    %1655 = vmatprep.subr.mxu0 0.0
    %1656 = vmatpush1.msra.mxu0 0.0
    %1657 = vmatprep.subr.mxu0 0.0
    %1658 = vmatpush1.msra.mxu0 0.0
    %1659 = vmatprep.subr.mxu0 0.0
    %1660 = vmatpush1.msra.mxu0 0.0
    %1661 = vmatprep.subr.mxu0 0.0
    %1662 = vmatpush1.msra.mxu0 0.0
    %1663 = vmatprep.subr.mxu0 0.0
    %1664 = vmatpush1.msra.mxu0 0.0
    %1665 = vmatprep.mubr.f32.mxu0 0.0
    %1666 = vmatmul.mubr.f32.gmra.mrb[0].mxu0 %v1599
    %v1667 = vpop.f32.mrb[0].mxu0
    %v1668 = vadd.f32 0.0, %v1667
    %v1669 = vpop.f32.mrb[0].mxu0
    %1670 = vdwg.mxu0
    %v1671 = vadd.f32 %v1597, %v1668
    %v1672 = vtanh.pop %v1671
    %1673 = vst.msk [vmem:[%s1596] sm:$0xff] %vm133, %v1672
    %v1674 = vld [vmem:[#allocation4] sm:$0xff]
    %v1675 = vld [vmem:[#allocation4 + $0x8] sm:$0xff]
    %v1676 = vld [vmem:[#allocation4 + $0x10] sm:$0xff]
    %v1677 = vld [vmem:[#allocation4 + $0x18] sm:$0xff]
    %v1678 = vld [vmem:[#allocation4 + $0x20] sm:$0xff]
    %v1679 = vld [vmem:[#allocation4 + $0x28] sm:$0xff]
    %v1680 = vld [vmem:[#allocation4 + $0x30] sm:$0xff]
    %v1681 = vld [vmem:[#allocation4 + $0x38] sm:$0xff]
    %v1682 = vld [vmem:[%s8] sm:$0xff]
    %v1683 = vld [vmem:[%s8 + $0x8] sm:$0xff]
    %v1684 = vld [vmem:[%s8 + $0x10] sm:$0xff]
    %v1685 = vld [vmem:[%s8 + $0x18] sm:$0xff]
    %v1686 = vld [vmem:[%s9] sm:$0x1]
    %v1688 = vlaneseq
    %v1689 = vshrl.u32 %v1688, 7
    %v1690 = vsub.s32 0, %v1689
    %v1691 = vrot.slane %v1686, %v1690
    %v1694 = vsel %vm133, %v1674, 0
    %v1697 = vsel %vm133, %v1675, 0
    %v1700 = vsel %vm133, %v1676, 0
    %v1703 = vsel %vm133, %v1677, 0
    %v1706 = vsel %vm133, %v1678, 0
    %v1709 = vsel %vm133, %v1679, 0
    %v1712 = vsel %vm133, %v1680, 0
    %v1715 = vsel %vm133, %v1681, 0
    %1717 = vmatprep.subr.mxu0 0.0
    %1718 = vmatpush1.msra.mxu0 %v1682
    %1719 = vmatprep.subr.mxu0 0.0
    %1720 = vmatpush1.msra.mxu0 %v1683
    %1721 = vmatprep.subr.mxu0 0.0
    %1722 = vmatpush1.msra.mxu0 %v1684
    %1723 = vmatprep.subr.mxu0 0.0
    %1724 = vmatpush1.msra.mxu0 %v1685
    %1725 = vmatprep.subr.mxu0 0.0
    %1726 = vmatpush1.msra.mxu0 0.0
    %1727 = vmatprep.subr.mxu0 0.0
    %1728 = vmatpush1.msra.mxu0 0.0
    %1729 = vmatprep.subr.mxu0 0.0
    %1730 = vmatpush1.msra.mxu0 0.0
    %1731 = vmatprep.subr.mxu0 0.0
    %1732 = vmatpush1.msra.mxu0 0.0
    %1733 = vmatprep.subr.mxu0 0.0
    %1734 = vmatpush1.msra.mxu0 0.0
    %1735 = vmatprep.subr.mxu0 0.0
    %1736 = vmatpush1.msra.mxu0 0.0
    %1737 = vmatprep.subr.mxu0 0.0
    %1738 = vmatpush1.msra.mxu0 0.0
    %1739 = vmatprep.subr.mxu0 0.0
    %1740 = vmatpush1.msra.mxu0 0.0
    %1741 = vmatprep.subr.mxu0 0.0
    %1742 = vmatpush1.msra.mxu0 0.0
    %1743 = vmatprep.subr.mxu0 0.0
    %1744 = vmatpush1.msra.mxu0 0.0
    %1745 = vmatprep.subr.mxu0 0.0
    %1746 = vmatpush1.msra.mxu0 0.0
    %1747 = vmatprep.subr.mxu0 0.0
    %1748 = vmatpush1.msra.mxu0 0.0
    %1749 = vmatprep.subr.mxu0 0.0
    %1750 = vmatpush1.msra.mxu0 0.0
    %1751 = vmatprep.subr.mxu0 0.0
    %1752 = vmatpush1.msra.mxu0 0.0
    %1753 = vmatprep.subr.mxu0 0.0
    %1754 = vmatpush1.msra.mxu0 0.0
    %1755 = vmatprep.subr.mxu0 0.0
    %1756 = vmatpush1.msra.mxu0 0.0
    %1757 = vmatprep.subr.mxu0 0.0
    %1758 = vmatpush1.msra.mxu0 0.0
    %1759 = vmatprep.subr.mxu0 0.0
    %1760 = vmatpush1.msra.mxu0 0.0
    %1761 = vmatprep.subr.mxu0 0.0
    %1762 = vmatpush1.msra.mxu0 0.0
    %1763 = vmatprep.subr.mxu0 0.0
    %1764 = vmatpush1.msra.mxu0 0.0
    %1765 = vmatprep.subr.mxu0 0.0
    %1766 = vmatpush1.msra.mxu0 0.0
    %1767 = vmatprep.subr.mxu0 0.0
    %1768 = vmatpush1.msra.mxu0 0.0
    %1769 = vmatprep.subr.mxu0 0.0
    %1770 = vmatpush1.msra.mxu0 0.0
    %1771 = vmatprep.subr.mxu0 0.0
    %1772 = vmatpush1.msra.mxu0 0.0
    %1773 = vmatprep.subr.mxu0 0.0
    %1774 = vmatpush1.msra.mxu0 0.0
    %1775 = vmatprep.subr.mxu0 0.0
    %1776 = vmatpush1.msra.mxu0 0.0
    %1777 = vmatprep.subr.mxu0 0.0
    %1778 = vmatpush1.msra.mxu0 0.0
    %1779 = vmatprep.subr.mxu0 0.0
    %1780 = vmatpush1.msra.mxu0 0.0
    %1781 = vmatprep.mubr.f32.mxu0 0.0
    %1782 = vmatmul.mubr.f32.gmra.mrb[0].mxu0 %v1694
    %v1783 = vpop.f32.mrb[0].mxu0
    %v1784 = vadd.f32 %v1691, %v1783
    %v1785 = vpop.f32.mrb[0].mxu0
    %1786 = vmatprep.mubr.f32.mxu0 0.0
    %1787 = vmatmul.mubr.f32.gmra.mrb[0].mxu0 %v1697
    %v1788 = vpop.f32.mrb[0].mxu0
    %v1789 = vadd.f32 %v1691, %v1788
    %v1790 = vpop.f32.mrb[0].mxu0
    %1791 = vmatprep.mubr.f32.mxu0 0.0
    %1792 = vmatmul.mubr.f32.gmra.mrb[0].mxu0 %v1700
    %v1793 = vpop.f32.mrb[0].mxu0
    %v1794 = vadd.f32 %v1691, %v1793
    %v1795 = vpop.f32.mrb[0].mxu0
    %1796 = vmatprep.mubr.f32.mxu0 0.0
    %1797 = vmatmul.mubr.f32.gmra.mrb[0].mxu0 %v1703
    %v1798 = vpop.f32.mrb[0].mxu0
    %v1799 = vadd.f32 %v1691, %v1798
    %v1800 = vpop.f32.mrb[0].mxu0
    %1801 = vmatprep.mubr.f32.mxu0 0.0
    %1802 = vmatmul.mubr.f32.gmra.mrb[0].mxu0 %v1706
    %v1803 = vpop.f32.mrb[0].mxu0
    %v1804 = vadd.f32 %v1691, %v1803
    %v1805 = vpop.f32.mrb[0].mxu0
    %1806 = vmatprep.mubr.f32.mxu0 0.0
    %1807 = vmatmul.mubr.f32.gmra.mrb[0].mxu0 %v1709
    %v1808 = vpop.f32.mrb[0].mxu0
    %v1809 = vadd.f32 %v1691, %v1808
    %v1810 = vpop.f32.mrb[0].mxu0
    %1811 = vmatprep.mubr.f32.mxu0 0.0
    %1812 = vmatmul.mubr.f32.gmra.mrb[0].mxu0 %v1712
    %v1813 = vpop.f32.mrb[0].mxu0
    %v1814 = vadd.f32 %v1691, %v1813
    %v1815 = vpop.f32.mrb[0].mxu0
    %1816 = vmatprep.mubr.f32.mxu0 0.0
    %1817 = vmatmul.mubr.f32.gmra.mrb[0].mxu0 %v1715
    %v1818 = vpop.f32.mrb[0].mxu0
    %v1819 = vadd.f32 %v1691, %v1818
    %v1820 = vpop.f32.mrb[0].mxu0
    %1821 = vdwg.mxu0
    %vm1822 = vcmask 15360
    %1823 = vst.msk [vmem:[%s10] sm:$0xff] %vm1822, %v1784
    %1824 = vst.msk [vmem:[%s10 + $0x8] sm:$0xff] %vm1822, %v1789
    %1825 = vst.msk [vmem:[%s10 + $0x10] sm:$0xff] %vm1822, %v1794
    %1826 = vst.msk [vmem:[%s10 + $0x18] sm:$0xff] %vm1822, %v1799
    %1827 = vst.msk [vmem:[%s10 + $0x20] sm:$0xff] %vm1822, %v1804
    %1828 = vst.msk [vmem:[%s10 + $0x28] sm:$0xff] %vm1822, %v1809
    %1829 = vst.msk [vmem:[%s10 + $0x30] sm:$0xff] %vm1822, %v1814
    %1830 = vst.msk [vmem:[%s10 + $0x38] sm:$0xff] %vm1822, %v1819
    // Predicated region
    $region64: #{tpu_custom_call.1} parent=1 // pred_check
      _
    $region65: #{tpu_custom_call.1} parent=1 // pred_check_branch
      %1832 = sbr.rel (0) target = $region67
    $region66: #{tpu_custom_call.1} parent=1 // pred_region
      _
    $region67: #{tpu_custom_call.1} parent=1 // pred_fallthru
      _
    // Predicated region
    $region68: #{tpu_custom_call.1} parent=1 // pred_check
      _
    $region69: #{tpu_custom_call.1} parent=1 // pred_check_branch
      %1834 = sbr.rel (0) target = $region71
    $region70: #{tpu_custom_call.1} parent=1 // pred_region
      _
    $region71: #{tpu_custom_call.1} parent=1 // pred_fallthru
      _
    %1835 = vsyncpa [#allocation9], 1
    %1836 = vsyncpa [#allocation11], 1
  %1837 = vsyncmov [#allocation5]
  %s1838 = vpop.sfrf %1837
  %p1839 = scmp.eq.s32.totalorder %s1838, 0
  %p1840 = pneg %p1839
  %1842 = shalt.err (%p1840)

</llo_original>
